<compile_context>
chip_gen: v6e
topology: v6e:2x2x1
jax: 0.10.0
libtpu: 0.0.40
codegen_flags: <defaults>
</compile_context>

<pallas_src>
import math

import jax
import jax.numpy as jnp
from jax.experimental import pallas as pl
from jax.experimental.pallas import tpu as pltpu

D = 32                       # embed dim
NHEADS = 4
HEAD_DIM = D // NHEADS
FF = 4
DF = FF * D                  # 128
EPS = 1e-5                   # nn.LayerNorm default eps
SCALE = 1.0 / math.sqrt(HEAD_DIM)
TB_MAX = 1024                # max batch rows (lanes) per grid step
STEP_ROWS = 256              # ~row-equivalents of per-grid-step overhead

# ---- packed-parameter layout (row offsets inside the slabs) -----------------
_W_SIZES = [("sa_wqkv", 3 * D), ("sa_wo", D), ("ca_w", D), ("ff_w1", DF),
            ("jblk", D)]
_B_SIZES = [("sa_bqkv", 3 * D), ("sa_bo", D), ("ca_b", D),
            ("ff_b1", DF), ("ff_b2", D),
            ("ln1_w", D), ("ln1_b", D), ("ln2_w", D), ("ln2_b", D),
            ("ln3_w", D), ("ln3_b", D)]


def _offsets(sizes):
    offs, acc = {}, 0
    for name, n in sizes:
        offs[name] = (acc, acc + n)
        acc += n
    return offs, acc


W_OFFS, W_ROWS = _offsets(_W_SIZES)   # bf16 weight slab rows (320 x 32)
B_OFFS, B_ROWS = _offsets(_B_SIZES)   # f32 bias/LN slab rows (512 x 1)


def _round_up(n, m):
    return ((n + m - 1) // m) * m


# -----------------------------------------------------------------------------
# Pallas kernel: one grid step == TB batch rows of BOTH streams, processed as
# a single feature-major (D, 2*TB) operand (p columns first, d columns second).
# -----------------------------------------------------------------------------
def cross_attn_kernel(p_ref, d_ref, w_ref, w2_ref, b_ref, p_out_ref, d_out_ref):
    tb = p_ref.shape[0]      # lanes per stream (multiple of 128)

    def wslice(name):        # bf16 (out, in) weight block from the slab
        lo, hi = W_OFFS[name]
        return w_ref[lo:hi, :]

    def bvec(name):          # f32 (out, 1) bias / LayerNorm vector
        lo, hi = B_OFFS[name]
        return b_ref[lo:hi, :]

    def mm(w, x):            # (O, I)bf16 @ (I, T)bf16 -> (O, T) f32 on the MXU
        return jnp.dot(w, x.astype(jnp.bfloat16),
                       preferred_element_type=jnp.float32)

    def layernorm(x, wname, bname):   # normalize over feature (sublane) axis
        mu = jnp.mean(x, axis=0, keepdims=True)
        xc = x - mu
        var = jnp.mean(xc * xc, axis=0, keepdims=True)
        return xc * jax.lax.rsqrt(var + EPS) * bvec(wname) + bvec(bname)

    def gelu(x):             # exact erf GELU (torch nn.GELU default)
        return 0.5 * x * (1.0 + jax.lax.erf(x * (1.0 / math.sqrt(2.0))))

    def swap(x):             # exchange the p-half and d-half of the lane axis
        return pltpu.roll(x, shift=tb, axis=1)   # shift is a 128-multiple

    # ---- load both streams, one in-kernel transpose to feature-major --------
    x_td = jnp.concatenate([p_ref[...], d_ref[...]], axis=0)   # (2*tb, D) f32
    x = x_td.T                                                  # (D, 2*tb) f32
    xb = x.astype(jnp.bfloat16)

    # ---- self-attention over the two tokens {p, d} of every batch row -------
    qkv = jnp.dot(wslice("sa_wqkv"), xb,
                  preferred_element_type=jnp.float32) + bvec("sa_bqkv")
    q, k, v = qkv[0:D], qkv[D:2 * D], qkv[2 * D:3 * D]          # (D, 2*tb) each

    # softmax over 2 keys == sigmoid of the scaled score difference (exact).
    # Per-head sums via the exact 0/1 bf16 block-diagonal matrix on the MXU;
    # scale + sigmoid stay in f32.  sigmoid(z) = 0.5*(1 + tanh(z/2)).
    sdiff = jnp.dot(wslice("jblk"), (q * (swap(k) - k)).astype(jnp.bfloat16),
                    preferred_element_type=jnp.float32)
    w_other = 0.5 * (1.0 + jnp.tanh((0.5 * SCALE) * sdiff))
    attn = v + w_other * (swap(v) - v)
    sa = mm(wslice("sa_wo"), attn) + bvec("sa_bo")
    x1 = layernorm(x + sa, "ln1_w", "ln1_b")

    # ---- cross-attention on the ORIGINAL p / d -------------------------------
    # Single key/value token => softmax weight is exactly 1, so
    # ca(q, kv, kv) == (out_proj ∘ v_proj)(kv) with the projection pre-fused
    # in the wrapper.  Each stream uses the OTHER stream's projection -> swap.
    ca = jnp.dot(wslice("ca_w"), xb,
                 preferred_element_type=jnp.float32) + bvec("ca_b")
    x2 = layernorm(x1 + swap(ca), "ln2_w", "ln2_b")

    # ---- feed-forward + final LayerNorm --------------------------------------
    h = gelu(mm(wslice("ff_w1"), x2) + bvec("ff_b1"))           # (DF, 2*tb)
    y = mm(w2_ref[...], h) + bvec("ff_b2")
    x3 = layernorm(x2 + y, "ln3_w", "ln3_b")

    # ---- back to token-major (tb, D) so the wrapper does no transposes -------
    p_out_ref[...] = x3[:, 0:tb].T
    d_out_ref[...] = x3[:, tb:2 * tb].T


# -----------------------------------------------------------------------------
# Wrapper: parameter packing, tile selection, pad-only layout, pallas_call.
# -----------------------------------------------------------------------------
def pack_params(params):
    """Pack PyTorch-layout params into (bf16 weight slab, bf16 ff_w2, f32 bias slab)."""
    # Exact 0/1 per-head block-diagonal matrix (bf16-representable exactly).
    r = jnp.arange(D)
    jblk = (r[:, None] // HEAD_DIM == r[None, :] // HEAD_DIM).astype(jnp.float32)

    # Pre-compose cross-attn out_proj ∘ v_proj (f32 compose, cast to bf16 once).
    ca_wv = params["ca_in_w"][2 * D:3 * D]
    ca_bv = params["ca_in_b"][2 * D:3 * D]
    w_ca = params["ca_out_w"] @ ca_wv
    b_ca = params["ca_out_w"] @ ca_bv + params["ca_out_b"]

    w_pieces = {"sa_wqkv": params["sa_in_w"], "sa_wo": params["sa_out_w"],
                "ca_w": w_ca, "ff_w1": params["ff_w1"], "jblk": jblk}
    b_pieces = {"sa_bqkv": params["sa_in_b"], "sa_bo": params["sa_out_b"],
                "ca_b": b_ca, "ff_b1": params["ff_b1"], "ff_b2": params["ff_b2"],
                "ln1_w": params["ln1_w"], "ln1_b": params["ln1_b"],
                "ln2_w": params["ln2_w"], "ln2_b": params["ln2_b"],
                "ln3_w": params["ln3_w"], "ln3_b": params["ln3_b"]}

    w_slab = jnp.concatenate([w_pieces[n] for n, _ in _W_SIZES],
                             axis=0).astype(jnp.bfloat16)                # (320, 32)
    w2 = params["ff_w2"].astype(jnp.bfloat16)                            # (32, 128)
    b_slab = jnp.concatenate([b_pieces[n] for n, _ in _B_SIZES],
                             axis=0).astype(jnp.float32).reshape(-1, 1)  # (512, 1)
    return w_slab, w2, b_slab


def _choose_tile(B):
    """Pick (tb, padded_batch): minimize padded lanes + per-step overhead;
    keep >=2 grid steps whenever the batch spans >1 128-lane tile (v7x cores)."""
    b128 = _round_up(B, 128)
    if b128 <= 128:
        return 128, 128
    best_tb, best_cost = 128, None
    for tb in range(128, min(TB_MAX, b128) + 1, 128):
        grid = pl.cdiv(b128, tb)
        if grid < 2:                       # give both v7x TensorCores work
            continue
        cost = grid * tb + grid * STEP_ROWS
        if best_cost is None or cost < best_cost:
            best_cost, best_tb = cost, tb
    bp = _round_up(b128, best_tb)
    return best_tb, bp


def cross_attn_block(p, d, params):
    B = p.shape[0]
    w_slab, w2, b_slab = pack_params(params)
    tb, bp = _choose_tile(B)

    # Token-major inputs: pad only -- no host-side transposes (the relayout is
    # a single in-kernel XLU transpose instead of extra HBM passes in XLA).
    pp = jnp.pad(p.reshape(B, D).astype(jnp.float32), ((0, bp - B), (0, 0)))
    dd = jnp.pad(d.reshape(B, D).astype(jnp.float32), ((0, bp - B), (0, 0)))

    x_spec = pl.BlockSpec((tb, D), lambda i: (i, 0))
    const_spec = lambda a: pl.BlockSpec(a.shape, lambda i: (0, 0))

    p_out, d_out = pl.pallas_call(
        cross_attn_kernel,
        grid=(bp // tb,),
        in_specs=[x_spec, x_spec,
                  const_spec(w_slab), const_spec(w2), const_spec(b_slab)],
        out_specs=(x_spec, x_spec),
        out_shape=(jax.ShapeDtypeStruct((bp, D), jnp.float32),
                   jax.ShapeDtypeStruct((bp, D), jnp.float32)),
        compiler_params=pltpu.CompilerParams(
            dimension_semantics=("parallel",),
            vmem_limit_bytes=32 * 1024 * 1024),
    )(pp, dd, w_slab, w2, b_slab)

    return p_out[:B].reshape(B, 1, D), d_out[:B].reshape(B, 1, D)


# -----------------------------------------------------------------------------
# Deterministic synthetic parameters (PyTorch-native layout) + JAX reference.
# -----------------------------------------------------------------------------
def init_params(key):
    keys = iter(jax.random.split(key, 18))

    def nrm(shape, scale=0.05):
        return (scale * jax.random.normal(next(keys), shape)).astype(jnp.float32)

    params = {}
    for pre in ("sa", "ca"):
        params[pre + "_in_w"] = nrm((3 * D, D))     # nn.MultiheadAttention in_proj
        params[pre + "_in_b"] = nrm((3 * D,))
        params[pre + "_out_w"] = nrm((D, D))        # out_proj
        params[pre + "_out_b"] = nrm((D,))
    params["ff_w1"] = nrm((FF * D, D))
    params["ff_b1"] = nrm((FF * D,))
    params["ff_w2"] = nrm((D, FF * D))
    params["ff_b2"] = nrm((D,))
    for name in ("ln1", "ln2", "ln3"):
        params[name + "_w"] = 1.0 + nrm((D,))
        params[name + "_b"] = nrm((D,))
    return params


def reference(p, d, params):
    def mha(q_in, k_in, v_in, pre):
        in_w, in_b = params[pre + "_in_w"], params[pre + "_in_b"]
        out_w, out_b = params[pre + "_out_w"], params[pre + "_out_b"]
        q = q_in @ in_w[0:D].T + in_b[0:D]
        k = k_in @ in_w[D:2 * D].T + in_b[D:2 * D]
        v = v_in @ in_w[2 * D:3 * D].T + in_b[2 * D:3 * D]
        B_, Lq, _ = q.shape
        Lk = k.shape[1]
        qh = q.reshape(B_, Lq, NHEADS, HEAD_DIM).transpose(0, 2, 1, 3)
        kh = k.reshape(B_, Lk, NHEADS, HEAD_DIM).transpose(0, 2, 1, 3)
        vh = v.reshape(B_, Lk, NHEADS, HEAD_DIM).transpose(0, 2, 1, 3)
        s = jnp.einsum("bhqe,bhke->bhqk", qh, kh) / math.sqrt(HEAD_DIM)
        a = jax.nn.softmax(s, axis=-1)
        o = jnp.einsum("bhqk,bhke->bhqe", a, vh).transpose(0, 2, 1, 3)
        return o.reshape(B_, Lq, D) @ out_w.T + out_b

    def ln(x, pre):
        mu = x.mean(-1, keepdims=True)
        var = ((x - mu) ** 2).mean(-1, keepdims=True)
        return (x - mu) / jnp.sqrt(var + EPS) * params[pre + "_w"] + params[pre + "_b"]

    x = jnp.concatenate([p, d], axis=1)
    x = ln(x + mha(x, x, x, "sa"), "ln1")
    p2 = mha(p, d, d, "ca")
    d2 = mha(d, p, p, "ca")
    x = ln(x + jnp.concatenate([p2, d2], axis=1), "ln2")
    h = jax.nn.gelu(x @ params["ff_w1"].T + params["ff_b1"], approximate=False)
    y = h @ params["ff_w2"].T + params["ff_b2"]
    x = ln(x + y, "ln3")
    return x[:, 0:1], x[:, 1:2]


if __name__ == "__main__":
    key = jax.random.PRNGKey(0)
    params = init_params(jax.random.fold_in(key, 1234))

    # Exercise: tiny batch (single 128-lane tile), padded tail (B=200 -> tb=128,
    # grid=2), and a multi-step / non-trivial tile case (B=640 -> tb=384, grid=2).
    for B in (2, 200, 640):
        kp = jax.random.fold_in(key, 2 * B)
        kd = jax.random.fold_in(key, 2 * B + 1)
        p = jax.random.normal(kp, (B, 1, D), jnp.float32)
        d = jax.random.normal(kd, (B, 1, D), jnp.float32)

        p_out, d_out = cross_attn_block(p, d, params)
        jax.block_until_ready((p_out, d_out))

        p_ref, d_ref = reference(p, d, params)
        assert p_out.shape == (B, 1, D) and d_out.shape == (B, 1, D)
        assert jnp.allclose(p_out, p_ref, atol=1e-2, rtol=1e-2), (
            f"B={B} p mismatch, max abs err {jnp.max(jnp.abs(p_out - p_ref))}")
        assert jnp.allclose(d_out, d_ref, atol=1e-2, rtol=1e-2), (
            f"B={B} d mismatch, max abs err {jnp.max(jnp.abs(d_out - d_ref))}")

    print("KERNEL_OK")
</pallas_src>

<mosaic_0001>
module attributes {stable_mosaic.version = 11 : i64} {
  func.func @cross_attn_kernel(%arg0: i32, %arg1: memref<128x32xf32, #tpu.memory_space<vmem>>, %arg2: memref<128x32xf32, #tpu.memory_space<vmem>>, %arg3: memref<320x32xbf16, #tpu.memory_space<vmem>>, %arg4: memref<32x128xbf16, #tpu.memory_space<vmem>>, %arg5: memref<512x1xf32, #tpu.memory_space<vmem>>, %arg6: memref<128x32xf32, #tpu.memory_space<vmem>>, %arg7: memref<128x32xf32, #tpu.memory_space<vmem>>) attributes {dimension_semantics = [#tpu.dimension_semantics<parallel>], iteration_bounds = array<i64: 1>, scalar_prefetch = 0 : i64, scratch_operands = 0 : i64, tpu.core_type = #tpu.core_type<tc>, window_params = [{transform_indices = @transform_0, window_bounds = array<i64: 128, 32>}, {transform_indices = @transform_1, window_bounds = array<i64: 128, 32>}, {pipeline_mode = #tpu.pipeline_mode<synchronous>, transform_indices = @transform_2, window_bounds = array<i64: 320, 32>}, {pipeline_mode = #tpu.pipeline_mode<synchronous>, transform_indices = @transform_3, window_bounds = array<i64: 32, 128>}, {pipeline_mode = #tpu.pipeline_mode<synchronous>, transform_indices = @transform_4, window_bounds = array<i64: 512, 1>}, {transform_indices = @transform_5, window_bounds = array<i64: 128, 32>}, {transform_indices = @transform_6, window_bounds = array<i64: 128, 32>}]} {
    %c0 = arith.constant 0 : index
    %c0_0 = arith.constant 0 : index
    %0 = vector.load %arg1[%c0, %c0_0] : memref<128x32xf32, #tpu.memory_space<vmem>>, vector<128x32xf32>
    %c0_1 = arith.constant 0 : index
    %c0_2 = arith.constant 0 : index
    %1 = vector.load %arg2[%c0_1, %c0_2] : memref<128x32xf32, #tpu.memory_space<vmem>>, vector<128x32xf32>
    %2 = tpu.concatenate %0, %1 in 0 : vector<128x32xf32>, vector<128x32xf32> -> vector<256x32xf32>
    %3 = tpu.transpose %2, [1, 0] : vector<256x32xf32> -> vector<32x256xf32>
    %4 = arith.truncf %3 : vector<32x256xf32> to vector<32x256xbf16>
    %c0_3 = arith.constant 0 : index
    %c0_4 = arith.constant 0 : index
    %5 = vector.load %arg3[%c0_3, %c0_4] : memref<320x32xbf16, #tpu.memory_space<vmem>>, vector<96x32xbf16>
    %cst = arith.constant dense<0.000000e+00> : vector<96x256xf32>
    %6 = tpu.matmul %5, %4, %cst {dimension_numbers = #tpu.dot_dimension_numbers<[1], [0], [0], [1], [0, 0, 1, 1], [], []>} : vector<96x32xbf16>, vector<32x256xbf16>, vector<96x256xf32> -> vector<96x256xf32>
    %c0_5 = arith.constant 0 : index
    %c0_6 = arith.constant 0 : index
    %7 = vector.load %arg5[%c0_5, %c0_6] : memref<512x1xf32, #tpu.memory_space<vmem>>, vector<96x1xf32>
    %8 = vector.broadcast %7 : vector<96x1xf32> to vector<96x256xf32>
    %9 = arith.addf %6, %8 : vector<96x256xf32>
    %10 = vector.extract_strided_slice %9 {offsets = [0, 0], sizes = [32, 256], strides = [1, 1]} : vector<96x256xf32> to vector<32x256xf32>
    %11 = vector.extract_strided_slice %9 {offsets = [32, 0], sizes = [32, 256], strides = [1, 1]} : vector<96x256xf32> to vector<32x256xf32>
    %12 = vector.extract_strided_slice %9 {offsets = [64, 0], sizes = [32, 256], strides = [1, 1]} : vector<96x256xf32> to vector<32x256xf32>
    %c288 = arith.constant 288 : index
    %c0_7 = arith.constant 0 : index
    %13 = vector.load %arg3[%c288, %c0_7] : memref<320x32xbf16, #tpu.memory_space<vmem>>, vector<32x32xbf16>
    %c128_i32 = arith.constant 128 : i32
    %14 = tpu.dynamic_rotate %11 by %c128_i32 dim 1 : vector<32x256xf32>, i32 -> vector<32x256xf32>
    %15 = arith.subf %14, %11 : vector<32x256xf32>
    %16 = arith.mulf %10, %15 : vector<32x256xf32>
    %17 = arith.truncf %16 : vector<32x256xf32> to vector<32x256xbf16>
    %cst_8 = arith.constant dense<0.000000e+00> : vector<32x256xf32>
    %18 = tpu.matmul %13, %17, %cst_8 {dimension_numbers = #tpu.dot_dimension_numbers<[1], [0], [0], [1], [0, 0, 1, 1], [], []>} : vector<32x32xbf16>, vector<32x256xbf16>, vector<32x256xf32> -> vector<32x256xf32>
    %cst_9 = arith.constant 0.176776692 : f32
    %19 = vector.broadcast %cst_9 : f32 to vector<32x256xf32>
    %20 = arith.mulf %19, %18 : vector<32x256xf32>
    %21 = math.tanh %20 : vector<32x256xf32>
    %cst_10 = arith.constant 1.000000e+00 : f32
    %22 = vector.broadcast %cst_10 : f32 to vector<32x256xf32>
    %23 = arith.addf %22, %21 : vector<32x256xf32>
    %cst_11 = arith.constant 5.000000e-01 : f32
    %24 = vector.broadcast %cst_11 : f32 to vector<32x256xf32>
    %25 = arith.mulf %24, %23 : vector<32x256xf32>
    %c128_i32_12 = arith.constant 128 : i32
    %26 = tpu.dynamic_rotate %12 by %c128_i32_12 dim 1 : vector<32x256xf32>, i32 -> vector<32x256xf32>
    %27 = arith.subf %26, %12 : vector<32x256xf32>
    %28 = arith.mulf %25, %27 : vector<32x256xf32>
    %29 = arith.addf %12, %28 : vector<32x256xf32>
    %c96 = arith.constant 96 : index
    %c0_13 = arith.constant 0 : index
    %30 = vector.load %arg3[%c96, %c0_13] : memref<320x32xbf16, #tpu.memory_space<vmem>>, vector<32x32xbf16>
    %31 = arith.truncf %29 : vector<32x256xf32> to vector<32x256xbf16>
    %cst_14 = arith.constant dense<0.000000e+00> : vector<32x256xf32>
    %32 = tpu.matmul %30, %31, %cst_14 {dimension_numbers = #tpu.dot_dimension_numbers<[1], [0], [0], [1], [0, 0, 1, 1], [], []>} : vector<32x32xbf16>, vector<32x256xbf16>, vector<32x256xf32> -> vector<32x256xf32>
    %c96_15 = arith.constant 96 : index
    %c0_16 = arith.constant 0 : index
    %33 = vector.load %arg5[%c96_15, %c0_16] : memref<512x1xf32, #tpu.memory_space<vmem>>, vector<32x1xf32>
    %34 = vector.broadcast %33 : vector<32x1xf32> to vector<32x256xf32>
    %35 = arith.addf %32, %34 : vector<32x256xf32>
    %36 = arith.addf %3, %35 : vector<32x256xf32>
    %cst_17 = arith.constant dense<0.000000e+00> : vector<256xf32>
    %37 = vector.multi_reduction <add>, %36, %cst_17 [0] : vector<32x256xf32> to vector<256xf32>
    %38 = vector.shape_cast %37 : vector<256xf32> to vector<1x256xf32>
    %cst_18 = arith.constant 3.200000e+01 : f32
    %39 = vector.broadcast %cst_18 : f32 to vector<1x256xf32>
    %40 = arith.divf %38, %39 : vector<1x256xf32>
    %41 = vector.broadcast %40 : vector<1x256xf32> to vector<32x256xf32>
    %42 = arith.subf %36, %41 : vector<32x256xf32>
    %43 = arith.mulf %42, %42 : vector<32x256xf32>
    %cst_19 = arith.constant dense<0.000000e+00> : vector<256xf32>
    %44 = vector.multi_reduction <add>, %43, %cst_19 [0] : vector<32x256xf32> to vector<256xf32>
    %45 = vector.shape_cast %44 : vector<256xf32> to vector<1x256xf32>
    %cst_20 = arith.constant 3.200000e+01 : f32
    %46 = vector.broadcast %cst_20 : f32 to vector<1x256xf32>
    %47 = arith.divf %45, %46 : vector<1x256xf32>
    %cst_21 = arith.constant 9.99999974E-6 : f32
    %48 = vector.broadcast %cst_21 : f32 to vector<1x256xf32>
    %49 = arith.addf %47, %48 : vector<1x256xf32>
    %50 = math.rsqrt %49 : vector<1x256xf32>
    %51 = vector.broadcast %50 : vector<1x256xf32> to vector<32x256xf32>
    %52 = arith.mulf %42, %51 : vector<32x256xf32>
    %c320 = arith.constant 320 : index
    %c0_22 = arith.constant 0 : index
    %53 = vector.load %arg5[%c320, %c0_22] : memref<512x1xf32, #tpu.memory_space<vmem>>, vector<32x1xf32>
    %54 = vector.broadcast %53 : vector<32x1xf32> to vector<32x256xf32>
    %55 = arith.mulf %52, %54 : vector<32x256xf32>
    %c352 = arith.constant 352 : index
    %c0_23 = arith.constant 0 : index
    %56 = vector.load %arg5[%c352, %c0_23] : memref<512x1xf32, #tpu.memory_space<vmem>>, vector<32x1xf32>
    %57 = vector.broadcast %56 : vector<32x1xf32> to vector<32x256xf32>
    %58 = arith.addf %55, %57 : vector<32x256xf32>
    %c128 = arith.constant 128 : index
    %c0_24 = arith.constant 0 : index
    %59 = vector.load %arg3[%c128, %c0_24] : memref<320x32xbf16, #tpu.memory_space<vmem>>, vector<32x32xbf16>
    %cst_25 = arith.constant dense<0.000000e+00> : vector<32x256xf32>
    %60 = tpu.matmul %59, %4, %cst_25 {dimension_numbers = #tpu.dot_dimension_numbers<[1], [0], [0], [1], [0, 0, 1, 1], [], []>} : vector<32x32xbf16>, vector<32x256xbf16>, vector<32x256xf32> -> vector<32x256xf32>
    %c128_26 = arith.constant 128 : index
    %c0_27 = arith.constant 0 : index
    %61 = vector.load %arg5[%c128_26, %c0_27] : memref<512x1xf32, #tpu.memory_space<vmem>>, vector<32x1xf32>
    %62 = vector.broadcast %61 : vector<32x1xf32> to vector<32x256xf32>
    %63 = arith.addf %60, %62 : vector<32x256xf32>
    %c128_i32_28 = arith.constant 128 : i32
    %64 = tpu.dynamic_rotate %63 by %c128_i32_28 dim 1 : vector<32x256xf32>, i32 -> vector<32x256xf32>
    %65 = arith.addf %58, %64 : vector<32x256xf32>
    %cst_29 = arith.constant dense<0.000000e+00> : vector<256xf32>
    %66 = vector.multi_reduction <add>, %65, %cst_29 [0] : vector<32x256xf32> to vector<256xf32>
    %67 = vector.shape_cast %66 : vector<256xf32> to vector<1x256xf32>
    %cst_30 = arith.constant 3.200000e+01 : f32
    %68 = vector.broadcast %cst_30 : f32 to vector<1x256xf32>
    %69 = arith.divf %67, %68 : vector<1x256xf32>
    %70 = vector.broadcast %69 : vector<1x256xf32> to vector<32x256xf32>
    %71 = arith.subf %65, %70 : vector<32x256xf32>
    %72 = arith.mulf %71, %71 : vector<32x256xf32>
    %cst_31 = arith.constant dense<0.000000e+00> : vector<256xf32>
    %73 = vector.multi_reduction <add>, %72, %cst_31 [0] : vector<32x256xf32> to vector<256xf32>
    %74 = vector.shape_cast %73 : vector<256xf32> to vector<1x256xf32>
    %cst_32 = arith.constant 3.200000e+01 : f32
    %75 = vector.broadcast %cst_32 : f32 to vector<1x256xf32>
    %76 = arith.divf %74, %75 : vector<1x256xf32>
    %cst_33 = arith.constant 9.99999974E-6 : f32
    %77 = vector.broadcast %cst_33 : f32 to vector<1x256xf32>
    %78 = arith.addf %76, %77 : vector<1x256xf32>
    %79 = math.rsqrt %78 : vector<1x256xf32>
    %80 = vector.broadcast %79 : vector<1x256xf32> to vector<32x256xf32>
    %81 = arith.mulf %71, %80 : vector<32x256xf32>
    %c384 = arith.constant 384 : index
    %c0_34 = arith.constant 0 : index
    %82 = vector.load %arg5[%c384, %c0_34] : memref<512x1xf32, #tpu.memory_space<vmem>>, vector<32x1xf32>
    %83 = vector.broadcast %82 : vector<32x1xf32> to vector<32x256xf32>
    %84 = arith.mulf %81, %83 : vector<32x256xf32>
    %c416 = arith.constant 416 : index
    %c0_35 = arith.constant 0 : index
    %85 = vector.load %arg5[%c416, %c0_35] : memref<512x1xf32, #tpu.memory_space<vmem>>, vector<32x1xf32>
    %86 = vector.broadcast %85 : vector<32x1xf32> to vector<32x256xf32>
    %87 = arith.addf %84, %86 : vector<32x256xf32>
    %c160 = arith.constant 160 : index
    %c0_36 = arith.constant 0 : index
    %88 = vector.load %arg3[%c160, %c0_36] : memref<320x32xbf16, #tpu.memory_space<vmem>>, vector<128x32xbf16>
    %89 = arith.truncf %87 : vector<32x256xf32> to vector<32x256xbf16>
    %cst_37 = arith.constant dense<0.000000e+00> : vector<128x256xf32>
    %90 = tpu.matmul %88, %89, %cst_37 {dimension_numbers = #tpu.dot_dimension_numbers<[1], [0], [0], [1], [0, 0, 1, 1], [], []>} : vector<128x32xbf16>, vector<32x256xbf16>, vector<128x256xf32> -> vector<128x256xf32>
    %c160_38 = arith.constant 160 : index
    %c0_39 = arith.constant 0 : index
    %91 = vector.load %arg5[%c160_38, %c0_39] : memref<512x1xf32, #tpu.memory_space<vmem>>, vector<128x1xf32>
    %92 = vector.broadcast %91 : vector<128x1xf32> to vector<128x256xf32>
    %93 = arith.addf %90, %92 : vector<128x256xf32>
    %cst_40 = arith.constant 5.000000e-01 : f32
    %94 = vector.broadcast %cst_40 : f32 to vector<128x256xf32>
    %95 = arith.mulf %94, %93 : vector<128x256xf32>
    %cst_41 = arith.constant 0.707106769 : f32
    %96 = vector.broadcast %cst_41 : f32 to vector<128x256xf32>
    %97 = arith.mulf %93, %96 : vector<128x256xf32>
    %98 = math.erf %97 : vector<128x256xf32>
    %cst_42 = arith.constant 1.000000e+00 : f32
    %99 = vector.broadcast %cst_42 : f32 to vector<128x256xf32>
    %100 = arith.addf %99, %98 : vector<128x256xf32>
    %101 = arith.mulf %95, %100 : vector<128x256xf32>
    %c0_43 = arith.constant 0 : index
    %c0_44 = arith.constant 0 : index
    %102 = vector.load %arg4[%c0_43, %c0_44] : memref<32x128xbf16, #tpu.memory_space<vmem>>, vector<32x128xbf16>
    %103 = arith.truncf %101 : vector<128x256xf32> to vector<128x256xbf16>
    %cst_45 = arith.constant dense<0.000000e+00> : vector<32x256xf32>
    %104 = tpu.matmul %102, %103, %cst_45 {dimension_numbers = #tpu.dot_dimension_numbers<[1], [0], [0], [1], [0, 0, 1, 1], [], []>} : vector<32x128xbf16>, vector<128x256xbf16>, vector<32x256xf32> -> vector<32x256xf32>
    %c288_46 = arith.constant 288 : index
    %c0_47 = arith.constant 0 : index
    %105 = vector.load %arg5[%c288_46, %c0_47] : memref<512x1xf32, #tpu.memory_space<vmem>>, vector<32x1xf32>
    %106 = vector.broadcast %105 : vector<32x1xf32> to vector<32x256xf32>
    %107 = arith.addf %104, %106 : vector<32x256xf32>
    %108 = arith.addf %87, %107 : vector<32x256xf32>
    %cst_48 = arith.constant dense<0.000000e+00> : vector<256xf32>
    %109 = vector.multi_reduction <add>, %108, %cst_48 [0] : vector<32x256xf32> to vector<256xf32>
    %110 = vector.shape_cast %109 : vector<256xf32> to vector<1x256xf32>
    %cst_49 = arith.constant 3.200000e+01 : f32
    %111 = vector.broadcast %cst_49 : f32 to vector<1x256xf32>
    %112 = arith.divf %110, %111 : vector<1x256xf32>
    %113 = vector.broadcast %112 : vector<1x256xf32> to vector<32x256xf32>
    %114 = arith.subf %108, %113 : vector<32x256xf32>
    %115 = arith.mulf %114, %114 : vector<32x256xf32>
    %cst_50 = arith.constant dense<0.000000e+00> : vector<256xf32>
    %116 = vector.multi_reduction <add>, %115, %cst_50 [0] : vector<32x256xf32> to vector<256xf32>
    %117 = vector.shape_cast %116 : vector<256xf32> to vector<1x256xf32>
    %cst_51 = arith.constant 3.200000e+01 : f32
    %118 = vector.broadcast %cst_51 : f32 to vector<1x256xf32>
    %119 = arith.divf %117, %118 : vector<1x256xf32>
    %cst_52 = arith.constant 9.99999974E-6 : f32
    %120 = vector.broadcast %cst_52 : f32 to vector<1x256xf32>
    %121 = arith.addf %119, %120 : vector<1x256xf32>
    %122 = math.rsqrt %121 : vector<1x256xf32>
    %123 = vector.broadcast %122 : vector<1x256xf32> to vector<32x256xf32>
    %124 = arith.mulf %114, %123 : vector<32x256xf32>
    %c448 = arith.constant 448 : index
    %c0_53 = arith.constant 0 : index
    %125 = vector.load %arg5[%c448, %c0_53] : memref<512x1xf32, #tpu.memory_space<vmem>>, vector<32x1xf32>
    %126 = vector.broadcast %125 : vector<32x1xf32> to vector<32x256xf32>
    %127 = arith.mulf %124, %126 : vector<32x256xf32>
    %c480 = arith.constant 480 : index
    %c0_54 = arith.constant 0 : index
    %128 = vector.load %arg5[%c480, %c0_54] : memref<512x1xf32, #tpu.memory_space<vmem>>, vector<32x1xf32>
    %129 = vector.broadcast %128 : vector<32x1xf32> to vector<32x256xf32>
    %130 = arith.addf %127, %129 : vector<32x256xf32>
    %131 = vector.extract_strided_slice %130 {offsets = [0, 0], sizes = [32, 128], strides = [1, 1]} : vector<32x256xf32> to vector<32x128xf32>
    %132 = tpu.transpose %131, [1, 0] : vector<32x128xf32> -> vector<128x32xf32>
    %c0_55 = arith.constant 0 : index
    %c0_56 = arith.constant 0 : index
    %133 = vector.load %arg6[%c0_55, %c0_56] : memref<128x32xf32, #tpu.memory_space<vmem>>, vector<128x32xf32>
    tpu.vector_store %arg6[%c0_55, %c0_56], %132 {strides = array<i32>} : memref<128x32xf32, #tpu.memory_space<vmem>>, vector<128x32xf32>,
    %134 = vector.extract_strided_slice %130 {offsets = [0, 128], sizes = [32, 128], strides = [1, 1]} : vector<32x256xf32> to vector<32x128xf32>
    %135 = tpu.transpose %134, [1, 0] : vector<32x128xf32> -> vector<128x32xf32>
    %c0_57 = arith.constant 0 : index
    %c0_58 = arith.constant 0 : index
    %136 = vector.load %arg7[%c0_57, %c0_58] : memref<128x32xf32, #tpu.memory_space<vmem>>, vector<128x32xf32>
    tpu.vector_store %arg7[%c0_57, %c0_58], %135 {strides = array<i32>} : memref<128x32xf32, #tpu.memory_space<vmem>>, vector<128x32xf32>,
    return
  }
  func.func @transform_0(%arg0: i32) -> (i32, i32) {
    %c0_i32 = arith.constant 0 : i32
    %c0_i32_0 = arith.constant 0 : i32
    return %arg0, %c0_i32 : i32, i32
  }
  func.func @transform_1(%arg0: i32) -> (i32, i32) {
    %c0_i32 = arith.constant 0 : i32
    %c0_i32_0 = arith.constant 0 : i32
    return %arg0, %c0_i32 : i32, i32
  }
  func.func @transform_2(%arg0: i32) -> (i32, i32) {
    %c0_i32 = arith.constant 0 : i32
    %c0_i32_0 = arith.constant 0 : i32
    %c0_i32_1 = arith.constant 0 : i32
    return %c0_i32, %c0_i32_0 : i32, i32
  }
  func.func @transform_3(%arg0: i32) -> (i32, i32) {
    %c0_i32 = arith.constant 0 : i32
    %c0_i32_0 = arith.constant 0 : i32
    %c0_i32_1 = arith.constant 0 : i32
    return %c0_i32, %c0_i32_0 : i32, i32
  }
  func.func @transform_4(%arg0: i32) -> (i32, i32) {
    %c0_i32 = arith.constant 0 : i32
    %c0_i32_0 = arith.constant 0 : i32
    %c0_i32_1 = arith.constant 0 : i32
    return %c0_i32, %c0_i32_0 : i32, i32
  }
  func.func @transform_5(%arg0: i32) -> (i32, i32) {
    %c0_i32 = arith.constant 0 : i32
    %c0_i32_0 = arith.constant 0 : i32
    return %arg0, %c0_i32 : i32, i32
  }
  func.func @transform_6(%arg0: i32) -> (i32, i32) {
    %c0_i32 = arith.constant 0 : i32
    %c0_i32_0 = arith.constant 0 : i32
    return %arg0, %c0_i32 : i32, i32
  }
}

</mosaic_0001>

<llo_original>
// kernel: tpu_custom_call.1
$region0: #{tpu_custom_call.1}
  #allocation0 [shape = 'u32[]', space=smem, size = 0x4, offset = 0x4, fixed_abs, tag = 'smem constant byte address 0x4 - core index']
  #allocation1 [shape = 'u32[144,128]{1,0:T(1,128)}', space=vmem, size = 0x12000, scoped, tag = 'internal scratch']
  %s0 = inlined_call_operand.vmem [shape: f32[128,32], index: 0, kind: input, shape index: {}]
  %s1 = inlined_call_operand.vmem [shape: f32[128,32], index: 1, kind: input, shape index: {}]
  %s2 = inlined_call_operand.vmem [shape: bf16[320,32], index: 2, kind: input, shape index: {}]
  %s3 = inlined_call_operand.vmem [shape: bf16[32,128], index: 3, kind: input, shape index: {}]
  %s4 = inlined_call_operand.vmem [shape: f32[512,1], index: 4, kind: input, shape index: {}]
  %s5 = inlined_call_operand.vmem [shape: f32[128,32], index: 5, kind: output, shape index: {0}]
  %s6 = inlined_call_operand.vmem [shape: f32[128,32], index: 6, kind: output, shape index: {1}]
  %7 = xla_tuple %s5, %s6
  %s8 = sld [smem:[#allocation0]]
  $region38: #{tpu_custom_call.1} parent=0
    _
  %s10 = ssub.s32 1, %s8
  %s11 = scalar_select 0, %s10, %s8
  // Predicated region
  $region2: #{tpu_custom_call.1} parent=0 // pred_check
    _
  $region3: #{tpu_custom_call.1} parent=0 // pred_check_branch
    %13 = sbr.rel (0) target = $region5
  $region4: #{tpu_custom_call.1} parent=0 // pred_region
    _
  $region5: #{tpu_custom_call.1} parent=0 // pred_fallthru
    _
  // Predicated region
  $region6: #{tpu_custom_call.1} parent=0 // pred_check
    _
  $region7: #{tpu_custom_call.1} parent=0 // pred_check_branch
    %15 = sbr.rel (0) target = $region9
  $region8: #{tpu_custom_call.1} parent=0 // pred_region
    _
  $region9: #{tpu_custom_call.1} parent=0 // pred_fallthru
    _
  // Predicated region
  $region10: #{tpu_custom_call.1} parent=0 // pred_check
    _
  $region11: #{tpu_custom_call.1} parent=0 // pred_check_branch
    %17 = sbr.rel (0) target = $region13
  $region12: #{tpu_custom_call.1} parent=0 // pred_region
    _
  $region13: #{tpu_custom_call.1} parent=0 // pred_fallthru
    _
  // Predicated region
  $region14: #{tpu_custom_call.1} parent=0 // pred_check
    _
  $region15: #{tpu_custom_call.1} parent=0 // pred_check_branch
    %19 = sbr.rel (0) target = $region17
  $region16: #{tpu_custom_call.1} parent=0 // pred_region
    _
  $region17: #{tpu_custom_call.1} parent=0 // pred_fallthru
    _
  // Predicated region
  $region18: #{tpu_custom_call.1} parent=0 // pred_check
    _
  $region19: #{tpu_custom_call.1} parent=0 // pred_check_branch
    %21 = sbr.rel (0) target = $region21
  $region20: #{tpu_custom_call.1} parent=0 // pred_region
    _
  $region21: #{tpu_custom_call.1} parent=0 // pred_fallthru
    _
  %v23 = vld [vmem:[%s0] sm:$0xff]
  %v24 = vld [vmem:[%s0 + $0x8] sm:$0xff]
  %v25 = vld [vmem:[%s0 + $0x10] sm:$0xff]
  %v26 = vld [vmem:[%s0 + $0x18] sm:$0xff]
  %v27 = vld [vmem:[%s0 + $0x20] sm:$0xff]
  %v28 = vld [vmem:[%s0 + $0x28] sm:$0xff]
  %v29 = vld [vmem:[%s0 + $0x30] sm:$0xff]
  %v30 = vld [vmem:[%s0 + $0x38] sm:$0xff]
  %v31 = vld [vmem:[%s0 + $0x40] sm:$0xff]
  %v32 = vld [vmem:[%s0 + $0x48] sm:$0xff]
  %v33 = vld [vmem:[%s0 + $0x50] sm:$0xff]
  %v34 = vld [vmem:[%s0 + $0x58] sm:$0xff]
  %v35 = vld [vmem:[%s0 + $0x60] sm:$0xff]
  %v36 = vld [vmem:[%s0 + $0x68] sm:$0xff]
  %v37 = vld [vmem:[%s0 + $0x70] sm:$0xff]
  %v38 = vld [vmem:[%s0 + $0x78] sm:$0xff]
  %v39 = vld [vmem:[%s1] sm:$0xff]
  %v40 = vld [vmem:[%s1 + $0x8] sm:$0xff]
  %v41 = vld [vmem:[%s1 + $0x10] sm:$0xff]
  %v42 = vld [vmem:[%s1 + $0x18] sm:$0xff]
  %v43 = vld [vmem:[%s1 + $0x20] sm:$0xff]
  %v44 = vld [vmem:[%s1 + $0x28] sm:$0xff]
  %v45 = vld [vmem:[%s1 + $0x30] sm:$0xff]
  %v46 = vld [vmem:[%s1 + $0x38] sm:$0xff]
  %v47 = vld [vmem:[%s1 + $0x40] sm:$0xff]
  %v48 = vld [vmem:[%s1 + $0x48] sm:$0xff]
  %v49 = vld [vmem:[%s1 + $0x50] sm:$0xff]
  %v50 = vld [vmem:[%s1 + $0x58] sm:$0xff]
  %v51 = vld [vmem:[%s1 + $0x60] sm:$0xff]
  %v52 = vld [vmem:[%s1 + $0x68] sm:$0xff]
  %v53 = vld [vmem:[%s1 + $0x70] sm:$0xff]
  %v54 = vld [vmem:[%s1 + $0x78] sm:$0xff]
  %55 = vxpose.xlu0.b32.start [1/16] %v23, 128
  %56 = vxpose.xlu0.b32.cont [2/16] %v24, 128
  %57 = vxpose.xlu0.b32.cont [3/16] %v25, 128
  %58 = vxpose.xlu0.b32.cont [4/16] %v26, 128
  %59 = vxpose.xlu0.b32.cont [5/16] %v27, 128
  %60 = vxpose.xlu0.b32.cont [6/16] %v28, 128
  %61 = vxpose.xlu0.b32.cont [7/16] %v29, 128
  %62 = vxpose.xlu0.b32.cont [8/16] %v30, 128
  %63 = vxpose.xlu0.b32.cont [9/16] %v31, 128
  %64 = vxpose.xlu0.b32.cont [10/16] %v32, 128
  %65 = vxpose.xlu0.b32.cont [11/16] %v33, 128
  %66 = vxpose.xlu0.b32.cont [12/16] %v34, 128
  %67 = vxpose.xlu0.b32.cont [13/16] %v35, 128
  %68 = vxpose.xlu0.b32.cont [14/16] %v36, 128
  %69 = vxpose.xlu0.b32.cont [15/16] %v37, 128
  %70 = vxpose.xlu0.b32.end [16/16] %v38, 128
  %v71 = vpop.trf.xlu0
  %v72 = vpop.trf.xlu0
  %v73 = vpop.trf.xlu0
  %v74 = vpop.trf.xlu0
  %v75 = vpop.trf.xlu0
  %v76 = vpop.trf.xlu0
  %v77 = vpop.trf.xlu0
  %v78 = vpop.trf.xlu0
  %v79 = vpop.trf.xlu0
  %v80 = vpop.trf.xlu0
  %v81 = vpop.trf.xlu0
  %v82 = vpop.trf.xlu0
  %v83 = vpop.trf.xlu0
  %v84 = vpop.trf.xlu0
  %v85 = vpop.trf.xlu0
  %v86 = vpop.trf.xlu0
  %87 = vxpose.xlu0.b32.start [1/16] %v39, 128
  %88 = vxpose.xlu0.b32.cont [2/16] %v40, 128
  %89 = vxpose.xlu0.b32.cont [3/16] %v41, 128
  %90 = vxpose.xlu0.b32.cont [4/16] %v42, 128
  %91 = vxpose.xlu0.b32.cont [5/16] %v43, 128
  %92 = vxpose.xlu0.b32.cont [6/16] %v44, 128
  %93 = vxpose.xlu0.b32.cont [7/16] %v45, 128
  %94 = vxpose.xlu0.b32.cont [8/16] %v46, 128
  %95 = vxpose.xlu0.b32.cont [9/16] %v47, 128
  %96 = vxpose.xlu0.b32.cont [10/16] %v48, 128
  %97 = vxpose.xlu0.b32.cont [11/16] %v49, 128
  %98 = vxpose.xlu0.b32.cont [12/16] %v50, 128
  %99 = vxpose.xlu0.b32.cont [13/16] %v51, 128
  %100 = vxpose.xlu0.b32.cont [14/16] %v52, 128
  %101 = vxpose.xlu0.b32.cont [15/16] %v53, 128
  %102 = vxpose.xlu0.b32.end [16/16] %v54, 128
  %v103 = vpop.trf.xlu0
  %v104 = vpop.trf.xlu0
  %v105 = vpop.trf.xlu0
  %v106 = vpop.trf.xlu0
  %v107 = vpop.trf.xlu0
  %v108 = vpop.trf.xlu0
  %v109 = vpop.trf.xlu0
  %v110 = vpop.trf.xlu0
  %v111 = vpop.trf.xlu0
  %v112 = vpop.trf.xlu0
  %v113 = vpop.trf.xlu0
  %v114 = vpop.trf.xlu0
  %v115 = vpop.trf.xlu0
  %v116 = vpop.trf.xlu0
  %v117 = vpop.trf.xlu0
  %v118 = vpop.trf.xlu0
  %v119 = vpack.c.bf16 %v72, %v71
  %v120 = vpack.c.bf16 %v104, %v103
  %v121 = vpack.c.bf16 %v74, %v73
  %v122 = vpack.c.bf16 %v106, %v105
  %v123 = vld [vmem:[%s2] sm:$0xf]
  %v124 = vld [vmem:[%s2 + $0x4] sm:$0xf]
  %v125 = vld [vmem:[%s2 + $0x8] sm:$0xf]
  %v126 = vld [vmem:[%s2 + $0xc] sm:$0xf]
  %v127 = vld [vmem:[%s2 + $0x10] sm:$0xf]
  %v128 = vld [vmem:[%s2 + $0x14] sm:$0xf]
  %v129 = vld [vmem:[%s2 + $0x18] sm:$0xf]
  %v130 = vld [vmem:[%s2 + $0x1c] sm:$0xf]
  %v131 = vld [vmem:[%s2 + $0x20] sm:$0xf]
  %v132 = vld [vmem:[%s2 + $0x24] sm:$0xf]
  %v133 = vld [vmem:[%s2 + $0x28] sm:$0xf]
  %v134 = vld [vmem:[%s2 + $0x2c] sm:$0xf]
  %v135 = vld [vmem:[%s4] sm:$0xff]
  %v136 = vld [vmem:[%s4 + $0x8] sm:$0xff]
  %v137 = vld [vmem:[%s4 + $0x10] sm:$0xff]
  %v138 = vld [vmem:[%s4 + $0x18] sm:$0xff]
  %v139 = vld [vmem:[%s4 + $0x20] sm:$0xff]
  %v140 = vld [vmem:[%s4 + $0x28] sm:$0xff]
  %v141 = vld [vmem:[%s4 + $0x30] sm:$0xff]
  %v142 = vld [vmem:[%s4 + $0x38] sm:$0xff]
  %v143 = vld [vmem:[%s4 + $0x40] sm:$0xff]
  %v144 = vld [vmem:[%s4 + $0x48] sm:$0xff]
  %v145 = vld [vmem:[%s4 + $0x50] sm:$0xff]
  %v146 = vld [vmem:[%s4 + $0x58] sm:$0xff]
  %148 = vset.pattern.permute.xlu0 0
  %149 = vperm.xlu0 %148, %v135
  %v150 = vpop.permute.xlu0 %149
  %153 = vset.pattern.permute.xlu0 0
  %154 = vperm.xlu0 %153, %v136
  %v155 = vpop.permute.xlu0 %154
  %158 = vset.pattern.permute.xlu0 0
  %159 = vperm.xlu0 %158, %v137
  %v160 = vpop.permute.xlu0 %159
  %163 = vset.pattern.permute.xlu0 0
  %164 = vperm.xlu0 %163, %v138
  %v165 = vpop.permute.xlu0 %164
  %168 = vset.pattern.permute.xlu0 0
  %169 = vperm.xlu0 %168, %v139
  %v170 = vpop.permute.xlu0 %169
  %173 = vset.pattern.permute.xlu0 0
  %174 = vperm.xlu0 %173, %v140
  %v175 = vpop.permute.xlu0 %174
  %178 = vset.pattern.permute.xlu0 0
  %179 = vperm.xlu0 %178, %v141
  %v180 = vpop.permute.xlu0 %179
  %183 = vset.pattern.permute.xlu0 0
  %184 = vperm.xlu0 %183, %v142
  %v185 = vpop.permute.xlu0 %184
  %188 = vset.pattern.permute.xlu0 0
  %189 = vperm.xlu0 %188, %v143
  %v190 = vpop.permute.xlu0 %189
  %193 = vset.pattern.permute.xlu0 0
  %194 = vperm.xlu0 %193, %v144
  %v195 = vpop.permute.xlu0 %194
  %198 = vset.pattern.permute.xlu0 0
  %199 = vperm.xlu0 %198, %v145
  %v200 = vpop.permute.xlu0 %199
  %203 = vset.pattern.permute.xlu0 0
  %204 = vperm.xlu0 %203, %v146
  %v205 = vpop.permute.xlu0 %204
  %v219 = vunpack.c.l.b16 %v123
  %v220 = vunpack.c.l.b16 %v124
  %v221 = vunpack.c.l.b16 %v125
  %v222 = vunpack.c.l.b16 %v126
  %v223 = vunpack.c.l.b16 %v127
  %v224 = vunpack.c.l.b16 %v128
  %v225 = vunpack.c.l.b16 %v129
  %v226 = vunpack.c.l.b16 %v130
  %v227 = vunpack.c.l.b16 %v131
  %v228 = vunpack.c.l.b16 %v132
  %v229 = vunpack.c.l.b16 %v133
  %v230 = vunpack.c.l.b16 %v134
  %v231 = vpack.c.b16 %v220, %v219
  %v232 = vpack.c.b16 %v222, %v221
  %v233 = vpack.c.b16 %v224, %v223
  %v234 = vpack.c.b16 %v226, %v225
  %v235 = vpack.c.b16 %v228, %v227
  %v236 = vpack.c.b16 %v230, %v229
  %vm237 = vcmask 261120
  %v239 = vsel %vm237, %v231, 0
  %v242 = vsel %vm237, %v232, 0
  %v245 = vsel %vm237, %v233, 0
  %v248 = vsel %vm237, %v234, 0
  %v251 = vsel %vm237, %v235, 0
  %v254 = vsel %vm237, %v236, 0
  %256 = vmatprep.subr.bf16.mxu0 0
  %257 = vmatpush1.bf16.msra.mxu0 0
  %258 = vmatprep.subr.bf16.mxu0 0
  %259 = vmatpush1.bf16.msra.mxu0 0
  %260 = vmatprep.subr.bf16.mxu0 0
  %261 = vmatpush1.bf16.msra.mxu0 0
  %262 = vmatprep.subr.bf16.mxu0 0
  %263 = vmatpush1.bf16.msra.mxu0 0
  %264 = vmatprep.subr.bf16.mxu0 0
  %265 = vmatpush1.bf16.msra.mxu0 0
  %266 = vmatprep.subr.bf16.mxu0 0
  %267 = vmatpush1.bf16.msra.mxu0 0
  %268 = vmatprep.subr.bf16.mxu0 %v122
  %269 = vmatpush1.bf16.msra.mxu0 %v121
  %270 = vmatprep.subr.bf16.mxu0 %v120
  %271 = vmatpush1.bf16.msra.mxu0 %v119
  %272 = vmatprep.subr.bf16.mxu0 0
  %273 = vmatpush2.bf16.msra.mxu0 0
  %274 = vmatprep.subr.bf16.mxu0 0
  %275 = vmatpush2.bf16.msra.mxu0 0
  %276 = vmatprep.subr.bf16.mxu0 0
  %277 = vmatpush2.bf16.msra.mxu0 0
  %278 = vmatprep.subr.bf16.mxu0 0
  %279 = vmatpush2.bf16.msra.mxu0 0
  %280 = vmatprep.subr.bf16.mxu0 0
  %281 = vmatpush2.bf16.msra.mxu0 0
  %282 = vmatprep.subr.bf16.mxu0 0
  %283 = vmatpush2.bf16.msra.mxu0 0
  %284 = vmatprep.subr.bf16.mxu0 0
  %285 = vmatpush2.bf16.msra.mxu0 0
  %286 = vmatprep.subr.bf16.mxu0 0
  %287 = vmatpush2.bf16.msra.mxu0 0
  %288 = vmatprep.mubr.bf16.mxu0 0
  %289 = vmatmul.mubr.bf16.gmra.mxu0 %v239
  %v290 = vpop.f32.mrf.mxu0
  %v291 = vadd.f32 %v150, %v290
  %v292 = vpop.f32.mrf.mxu0
  %v293 = vadd.f32 %v150, %v292
  %v294 = vpop.f32.mrf.mxu0
  %v295 = vadd.f32 %v155, %v294
  %v296 = vpop.f32.mrf.mxu0
  %v297 = vadd.f32 %v155, %v296
  %298 = vmatprep.mubr.bf16.mxu0 0
  %299 = vmatmul.mubr.bf16.gmra.mxu0 %v242
  %v300 = vpop.f32.mrf.mxu0
  %v301 = vadd.f32 %v160, %v300
  %v302 = vpop.f32.mrf.mxu0
  %v303 = vadd.f32 %v160, %v302
  %v304 = vpop.f32.mrf.mxu0
  %v305 = vadd.f32 %v165, %v304
  %v306 = vpop.f32.mrf.mxu0
  %v307 = vadd.f32 %v165, %v306
  %308 = vmatprep.mubr.bf16.mxu0 0
  %309 = vmatmul.mubr.bf16.gmra.mxu0 %v245
  %v310 = vpop.f32.mrf.mxu0
  %v311 = vadd.f32 %v170, %v310
  %v312 = vpop.f32.mrf.mxu0
  %v313 = vadd.f32 %v170, %v312
  %v314 = vpop.f32.mrf.mxu0
  %v315 = vadd.f32 %v175, %v314
  %v316 = vpop.f32.mrf.mxu0
  %v317 = vadd.f32 %v175, %v316
  %318 = vmatprep.mubr.bf16.mxu0 0
  %319 = vmatmul.mubr.bf16.gmra.mxu0 %v248
  %v320 = vpop.f32.mrf.mxu0
  %v321 = vadd.f32 %v180, %v320
  %v322 = vpop.f32.mrf.mxu0
  %v323 = vadd.f32 %v180, %v322
  %v324 = vpop.f32.mrf.mxu0
  %v325 = vadd.f32 %v185, %v324
  %v326 = vpop.f32.mrf.mxu0
  %v327 = vadd.f32 %v185, %v326
  %328 = vmatprep.mubr.bf16.mxu0 0
  %329 = vmatmul.mubr.bf16.gmra.mxu0 %v251
  %v330 = vpop.f32.mrf.mxu0
  %v331 = vadd.f32 %v190, %v330
  %v332 = vpop.f32.mrf.mxu0
  %v333 = vadd.f32 %v190, %v332
  %v334 = vpop.f32.mrf.mxu0
  %v335 = vadd.f32 %v195, %v334
  %v336 = vpop.f32.mrf.mxu0
  %v337 = vadd.f32 %v195, %v336
  %338 = vmatprep.mubr.bf16.mxu0 0
  %339 = vmatmul.mubr.bf16.gmra.mxu0 %v254
  %v340 = vpop.f32.mrf.mxu0
  %v341 = vadd.f32 %v200, %v340
  %v342 = vpop.f32.mrf.mxu0
  %v343 = vadd.f32 %v200, %v342
  %v344 = vpop.f32.mrf.mxu0
  %v345 = vadd.f32 %v205, %v344
  %v346 = vpop.f32.mrf.mxu0
  %v347 = vadd.f32 %v205, %v346
  %348 = vdwg.mxu0
  %v349 = vld [vmem:[%s2 + $0x90] sm:$0xf]
  %v350 = vld [vmem:[%s2 + $0x94] sm:$0xf]
  %v351 = vld [vmem:[%s2 + $0x98] sm:$0xf]
  %v352 = vld [vmem:[%s2 + $0x9c] sm:$0xf]
  %v353 = vsub.f32 %v313, %v311
  %v354 = vsub.f32 %v311, %v313
  %v355 = vsub.f32 %v317, %v315
  %v356 = vsub.f32 %v315, %v317
  %v357 = vsub.f32 %v323, %v321
  %v358 = vsub.f32 %v321, %v323
  %v359 = vsub.f32 %v327, %v325
  %v360 = vsub.f32 %v325, %v327
  %v361 = vmul.f32 %v291, %v353
  %v362 = vmul.f32 %v293, %v354
  %v363 = vmul.f32 %v295, %v355
  %v364 = vmul.f32 %v297, %v356
  %v365 = vmul.f32 %v301, %v357
  %v366 = vmul.f32 %v303, %v358
  %v367 = vmul.f32 %v305, %v359
  %v368 = vmul.f32 %v307, %v360
  %v369 = vpack.c.bf16 %v363, %v361
  %v370 = vpack.c.bf16 %v364, %v362
  %v371 = vpack.c.bf16 %v367, %v365
  %v372 = vpack.c.bf16 %v368, %v366
  %v377 = vunpack.c.l.b16 %v349
  %v378 = vunpack.c.l.b16 %v350
  %v379 = vunpack.c.l.b16 %v351
  %v380 = vunpack.c.l.b16 %v352
  %v381 = vpack.c.b16 %v378, %v377
  %v382 = vpack.c.b16 %v380, %v379
  %v384 = vsel %vm237, %v381, 0
  %v387 = vsel %vm237, %v382, 0
  %389 = vmatprep.subr.bf16.mxu0 0
  %390 = vmatpush1.bf16.msra.mxu0 0
  %391 = vmatprep.subr.bf16.mxu0 0
  %392 = vmatpush1.bf16.msra.mxu0 0
  %393 = vmatprep.subr.bf16.mxu0 0
  %394 = vmatpush1.bf16.msra.mxu0 0
  %395 = vmatprep.subr.bf16.mxu0 0
  %396 = vmatpush1.bf16.msra.mxu0 0
  %397 = vmatprep.subr.bf16.mxu0 0
  %398 = vmatpush1.bf16.msra.mxu0 0
  %399 = vmatprep.subr.bf16.mxu0 0
  %400 = vmatpush1.bf16.msra.mxu0 0
  %401 = vmatprep.subr.bf16.mxu0 %v372
  %402 = vmatpush1.bf16.msra.mxu0 %v371
  %403 = vmatprep.subr.bf16.mxu0 %v370
  %404 = vmatpush1.bf16.msra.mxu0 %v369
  %405 = vmatprep.subr.bf16.mxu0 0
  %406 = vmatpush2.bf16.msra.mxu0 0
  %407 = vmatprep.subr.bf16.mxu0 0
  %408 = vmatpush2.bf16.msra.mxu0 0
  %409 = vmatprep.subr.bf16.mxu0 0
  %410 = vmatpush2.bf16.msra.mxu0 0
  %411 = vmatprep.subr.bf16.mxu0 0
  %412 = vmatpush2.bf16.msra.mxu0 0
  %413 = vmatprep.subr.bf16.mxu0 0
  %414 = vmatpush2.bf16.msra.mxu0 0
  %415 = vmatprep.subr.bf16.mxu0 0
  %416 = vmatpush2.bf16.msra.mxu0 0
  %417 = vmatprep.subr.bf16.mxu0 0
  %418 = vmatpush2.bf16.msra.mxu0 0
  %419 = vmatprep.subr.bf16.mxu0 0
  %420 = vmatpush2.bf16.msra.mxu0 0
  %421 = vmatprep.mubr.bf16.mxu0 0
  %422 = vmatmul.mubr.bf16.gmra.mxu0 %v384
  %v423 = vpop.f32.mrf.mxu0
  %v424 = vadd.f32 0.0, %v423
  %v425 = vpop.f32.mrf.mxu0
  %v426 = vadd.f32 0.0, %v425
  %v427 = vpop.f32.mrf.mxu0
  %v428 = vadd.f32 0.0, %v427
  %v429 = vpop.f32.mrf.mxu0
  %v430 = vadd.f32 0.0, %v429
  %431 = vmatprep.mubr.bf16.mxu0 0
  %432 = vmatmul.mubr.bf16.gmra.mxu0 %v387
  %v433 = vpop.f32.mrf.mxu0
  %v434 = vadd.f32 0.0, %v433
  %v435 = vpop.f32.mrf.mxu0
  %v436 = vadd.f32 0.0, %v435
  %v437 = vpop.f32.mrf.mxu0
  %v438 = vadd.f32 0.0, %v437
  %v439 = vpop.f32.mrf.mxu0
  %v440 = vadd.f32 0.0, %v439
  %441 = vdwg.mxu0
  %v442 = vmul.f32 %v424, 0.17677669
  %v443 = vmul.f32 %v426, 0.17677669
  %v444 = vmul.f32 %v428, 0.17677669
  %v445 = vmul.f32 %v430, 0.17677669
  %v446 = vmul.f32 %v434, 0.17677669
  %v447 = vmul.f32 %v436, 0.17677669
  %v448 = vmul.f32 %v438, 0.17677669
  %v449 = vmul.f32 %v440, 0.17677669
  %v450 = vtanh.pop %v442
  %v451 = vtanh.pop %v443
  %v452 = vtanh.pop %v444
  %v453 = vtanh.pop %v445
  %v454 = vtanh.pop %v446
  %v455 = vtanh.pop %v447
  %v456 = vtanh.pop %v448
  %v457 = vtanh.pop %v449
  %v458 = vadd.f32 %v450, 1.0
  %v459 = vadd.f32 %v451, 1.0
  %v460 = vadd.f32 %v452, 1.0
  %v461 = vadd.f32 %v453, 1.0
  %v462 = vadd.f32 %v454, 1.0
  %v463 = vadd.f32 %v455, 1.0
  %v464 = vadd.f32 %v456, 1.0
  %v465 = vadd.f32 %v457, 1.0
  %v466 = vmul.f32 %v458, 0.5
  %v467 = vmul.f32 %v459, 0.5
  %v468 = vmul.f32 %v460, 0.5
  %v469 = vmul.f32 %v461, 0.5
  %v470 = vmul.f32 %v462, 0.5
  %v471 = vmul.f32 %v463, 0.5
  %v472 = vmul.f32 %v464, 0.5
  %v473 = vmul.f32 %v465, 0.5
  %v474 = vsub.f32 %v333, %v331
  %v475 = vsub.f32 %v331, %v333
  %v476 = vsub.f32 %v337, %v335
  %v477 = vsub.f32 %v335, %v337
  %v478 = vsub.f32 %v343, %v341
  %v479 = vsub.f32 %v341, %v343
  %v480 = vsub.f32 %v347, %v345
  %v481 = vsub.f32 %v345, %v347
  %v482 = vmul.f32 %v466, %v474
  %v483 = vmul.f32 %v467, %v475
  %v484 = vmul.f32 %v468, %v476
  %v485 = vmul.f32 %v469, %v477
  %v486 = vmul.f32 %v470, %v478
  %v487 = vmul.f32 %v471, %v479
  %v488 = vmul.f32 %v472, %v480
  %v489 = vmul.f32 %v473, %v481
  %v490 = vadd.f32 %v331, %v482
  %v491 = vadd.f32 %v333, %v483
  %v492 = vadd.f32 %v335, %v484
  %v493 = vadd.f32 %v337, %v485
  %v494 = vadd.f32 %v341, %v486
  %v495 = vadd.f32 %v343, %v487
  %v496 = vadd.f32 %v345, %v488
  %v497 = vadd.f32 %v347, %v489
  %v498 = vld [vmem:[%s2 + $0x30] sm:$0xf]
  %v499 = vld [vmem:[%s2 + $0x34] sm:$0xf]
  %v500 = vld [vmem:[%s2 + $0x38] sm:$0xf]
  %v501 = vld [vmem:[%s2 + $0x3c] sm:$0xf]
  %v502 = vpack.c.bf16 %v492, %v490
  %v503 = vpack.c.bf16 %v493, %v491
  %v504 = vpack.c.bf16 %v496, %v494
  %v505 = vpack.c.bf16 %v497, %v495
  %v506 = vld [vmem:[%s4 + $0x60] sm:$0xff]
  %v507 = vld [vmem:[%s4 + $0x68] sm:$0xff]
  %v508 = vld [vmem:[%s4 + $0x70] sm:$0xff]
  %v509 = vld [vmem:[%s4 + $0x78] sm:$0xff]
  %511 = vset.pattern.permute.xlu0 0
  %512 = vperm.xlu0 %511, %v506
  %v513 = vpop.permute.xlu0 %512
  %516 = vset.pattern.permute.xlu0 0
  %517 = vperm.xlu0 %516, %v507
  %v518 = vpop.permute.xlu0 %517
  %521 = vset.pattern.permute.xlu0 0
  %522 = vperm.xlu0 %521, %v508
  %v523 = vpop.permute.xlu0 %522
  %526 = vset.pattern.permute.xlu0 0
  %527 = vperm.xlu0 %526, %v509
  %v528 = vpop.permute.xlu0 %527
  %v534 = vunpack.c.l.b16 %v498
  %v535 = vunpack.c.l.b16 %v499
  %v536 = vunpack.c.l.b16 %v500
  %v537 = vunpack.c.l.b16 %v501
  %v538 = vpack.c.b16 %v535, %v534
  %v539 = vpack.c.b16 %v537, %v536
  %v541 = vsel %vm237, %v538, 0
  %v544 = vsel %vm237, %v539, 0
  %546 = vmatprep.subr.bf16.mxu0 0
  %547 = vmatpush1.bf16.msra.mxu0 0
  %548 = vmatprep.subr.bf16.mxu0 0
  %549 = vmatpush1.bf16.msra.mxu0 0
  %550 = vmatprep.subr.bf16.mxu0 0
  %551 = vmatpush1.bf16.msra.mxu0 0
  %552 = vmatprep.subr.bf16.mxu0 0
  %553 = vmatpush1.bf16.msra.mxu0 0
  %554 = vmatprep.subr.bf16.mxu0 0
  %555 = vmatpush1.bf16.msra.mxu0 0
  %556 = vmatprep.subr.bf16.mxu0 0
  %557 = vmatpush1.bf16.msra.mxu0 0
  %558 = vmatprep.subr.bf16.mxu0 %v505
  %559 = vmatpush1.bf16.msra.mxu0 %v504
  %560 = vmatprep.subr.bf16.mxu0 %v503
  %561 = vmatpush1.bf16.msra.mxu0 %v502
  %562 = vmatprep.subr.bf16.mxu0 0
  %563 = vmatpush2.bf16.msra.mxu0 0
  %564 = vmatprep.subr.bf16.mxu0 0
  %565 = vmatpush2.bf16.msra.mxu0 0
  %566 = vmatprep.subr.bf16.mxu0 0
  %567 = vmatpush2.bf16.msra.mxu0 0
  %568 = vmatprep.subr.bf16.mxu0 0
  %569 = vmatpush2.bf16.msra.mxu0 0
  %570 = vmatprep.subr.bf16.mxu0 0
  %571 = vmatpush2.bf16.msra.mxu0 0
  %572 = vmatprep.subr.bf16.mxu0 0
  %573 = vmatpush2.bf16.msra.mxu0 0
  %574 = vmatprep.subr.bf16.mxu0 0
  %575 = vmatpush2.bf16.msra.mxu0 0
  %576 = vmatprep.subr.bf16.mxu0 0
  %577 = vmatpush2.bf16.msra.mxu0 0
  %578 = vmatprep.mubr.bf16.mxu0 0
  %579 = vmatmul.mubr.bf16.gmra.mxu0 %v541
  %v580 = vpop.f32.mrf.mxu0
  %v581 = vadd.f32 %v513, %v580
  %v582 = vpop.f32.mrf.mxu0
  %v583 = vadd.f32 %v513, %v582
  %v584 = vpop.f32.mrf.mxu0
  %v585 = vadd.f32 %v518, %v584
  %v586 = vpop.f32.mrf.mxu0
  %v587 = vadd.f32 %v518, %v586
  %588 = vmatprep.mubr.bf16.mxu0 0
  %589 = vmatmul.mubr.bf16.gmra.mxu0 %v544
  %v590 = vpop.f32.mrf.mxu0
  %v591 = vadd.f32 %v523, %v590
  %v592 = vpop.f32.mrf.mxu0
  %v593 = vadd.f32 %v523, %v592
  %v594 = vpop.f32.mrf.mxu0
  %v595 = vadd.f32 %v528, %v594
  %v596 = vpop.f32.mrf.mxu0
  %v597 = vadd.f32 %v528, %v596
  %598 = vdwg.mxu0
  %v599 = vadd.f32 %v71, %v581
  %v600 = vadd.f32 %v103, %v583
  %v601 = vadd.f32 %v72, %v585
  %v602 = vadd.f32 %v104, %v587
  %v603 = vadd.f32 %v73, %v591
  %v604 = vadd.f32 %v105, %v593
  %v605 = vadd.f32 %v74, %v595
  %v606 = vadd.f32 %v106, %v597
  %v607 = vadd.f32 %v599, %v601
  %v608 = vadd.f32 %v607, %v603
  %v609 = vadd.f32 %v608, %v605
  %v610 = vrot.slane %v609, 4
  %v611 = vadd.f32 %v609, %v610
  %v612 = vrot.slane %v611, 2
  %v613 = vadd.f32 %v611, %v612
  %v614 = vrot.slane %v613, 1
  %v615 = vadd.f32 %v613, %v614
  %v616 = vadd.f32 %v600, %v602
  %v617 = vadd.f32 %v616, %v604
  %v618 = vadd.f32 %v617, %v606
  %v619 = vrot.slane %v618, 4
  %v620 = vadd.f32 %v618, %v619
  %v621 = vrot.slane %v620, 2
  %v622 = vadd.f32 %v620, %v621
  %v623 = vrot.slane %v622, 1
  %v624 = vadd.f32 %v622, %v623
  %v625 = vrcp.pop 32.0
  %v626 = vmul.f32 %v615, %v625
  %v627 = vmul.f32 %v624, %v625
  %v628 = vsub.f32 %v599, %v626
  %v629 = vsub.f32 %v600, %v627
  %v630 = vsub.f32 %v601, %v626
  %v631 = vsub.f32 %v602, %v627
  %v632 = vsub.f32 %v603, %v626
  %v633 = vsub.f32 %v604, %v627
  %v634 = vsub.f32 %v605, %v626
  %v635 = vsub.f32 %v606, %v627
  %v636 = vmul.f32 %v628, %v628
  %v637 = vmul.f32 %v629, %v629
  %v638 = vmul.f32 %v630, %v630
  %v639 = vmul.f32 %v631, %v631
  %v640 = vmul.f32 %v632, %v632
  %v641 = vmul.f32 %v633, %v633
  %v642 = vmul.f32 %v634, %v634
  %v643 = vmul.f32 %v635, %v635
  %v644 = vadd.f32 %v636, %v638
  %v645 = vadd.f32 %v644, %v640
  %v646 = vadd.f32 %v645, %v642
  %v647 = vrot.slane %v646, 4
  %v648 = vadd.f32 %v646, %v647
  %v649 = vrot.slane %v648, 2
  %v650 = vadd.f32 %v648, %v649
  %v651 = vrot.slane %v650, 1
  %v652 = vadd.f32 %v650, %v651
  %v653 = vadd.f32 %v637, %v639
  %v654 = vadd.f32 %v653, %v641
  %v655 = vadd.f32 %v654, %v643
  %v656 = vrot.slane %v655, 4
  %v657 = vadd.f32 %v655, %v656
  %v658 = vrot.slane %v657, 2
  %v659 = vadd.f32 %v657, %v658
  %v660 = vrot.slane %v659, 1
  %v661 = vadd.f32 %v659, %v660
  %v662 = vmul.f32 %v652, %v625
  %v663 = vmul.f32 %v661, %v625
  %v664 = vadd.f32 %v662, 1e-05
  %v665 = vadd.f32 %v663, 1e-05
  %v666 = vrsqrt.pop %v664
  %v667 = vrsqrt.pop %v665
  %v668 = vmul.f32 %v628, %v666
  %v669 = vmul.f32 %v629, %v667
  %v670 = vmul.f32 %v630, %v666
  %v671 = vmul.f32 %v631, %v667
  %v672 = vmul.f32 %v632, %v666
  %v673 = vmul.f32 %v633, %v667
  %v674 = vmul.f32 %v634, %v666
  %v675 = vmul.f32 %v635, %v667
  %v676 = vld [vmem:[%s4 + $0x140] sm:$0xff]
  %v677 = vld [vmem:[%s4 + $0x148] sm:$0xff]
  %v678 = vld [vmem:[%s4 + $0x150] sm:$0xff]
  %v679 = vld [vmem:[%s4 + $0x158] sm:$0xff]
  %681 = vset.pattern.permute.xlu0 0
  %682 = vperm.xlu0 %681, %v676
  %v683 = vpop.permute.xlu0 %682
  %686 = vset.pattern.permute.xlu0 0
  %687 = vperm.xlu0 %686, %v677
  %v688 = vpop.permute.xlu0 %687
  %691 = vset.pattern.permute.xlu0 0
  %692 = vperm.xlu0 %691, %v678
  %v693 = vpop.permute.xlu0 %692
  %696 = vset.pattern.permute.xlu0 0
  %697 = vperm.xlu0 %696, %v679
  %v698 = vpop.permute.xlu0 %697
  %v700 = vmul.f32 %v668, %v683
  %v701 = vmul.f32 %v669, %v683
  %v702 = vmul.f32 %v670, %v688
  %v703 = vmul.f32 %v671, %v688
  %v704 = vmul.f32 %v672, %v693
  %v705 = vmul.f32 %v673, %v693
  %v706 = vmul.f32 %v674, %v698
  %v707 = vmul.f32 %v675, %v698
  %v708 = vld [vmem:[%s4 + $0x160] sm:$0xff]
  %v709 = vld [vmem:[%s4 + $0x168] sm:$0xff]
  %v710 = vld [vmem:[%s4 + $0x170] sm:$0xff]
  %v711 = vld [vmem:[%s4 + $0x178] sm:$0xff]
  %713 = vset.pattern.permute.xlu0 0
  %714 = vperm.xlu0 %713, %v708
  %v715 = vpop.permute.xlu0 %714
  %718 = vset.pattern.permute.xlu0 0
  %719 = vperm.xlu0 %718, %v709
  %v720 = vpop.permute.xlu0 %719
  %723 = vset.pattern.permute.xlu0 0
  %724 = vperm.xlu0 %723, %v710
  %v725 = vpop.permute.xlu0 %724
  %728 = vset.pattern.permute.xlu0 0
  %729 = vperm.xlu0 %728, %v711
  %v730 = vpop.permute.xlu0 %729
  %v732 = vadd.f32 %v700, %v715
  %v733 = vadd.f32 %v701, %v715
  %v734 = vadd.f32 %v702, %v720
  %v735 = vadd.f32 %v703, %v720
  %v736 = vadd.f32 %v704, %v725
  %v737 = vadd.f32 %v705, %v725
  %v738 = vadd.f32 %v706, %v730
  %v739 = vadd.f32 %v707, %v730
  %v740 = vld [vmem:[%s2 + $0x40] sm:$0xf]
  %v741 = vld [vmem:[%s2 + $0x44] sm:$0xf]
  %v742 = vld [vmem:[%s2 + $0x48] sm:$0xf]
  %v743 = vld [vmem:[%s2 + $0x4c] sm:$0xf]
  %v744 = vld [vmem:[%s4 + $0x80] sm:$0xff]
  %v745 = vld [vmem:[%s4 + $0x88] sm:$0xff]
  %v746 = vld [vmem:[%s4 + $0x90] sm:$0xff]
  %v747 = vld [vmem:[%s4 + $0x98] sm:$0xff]
  %749 = vset.pattern.permute.xlu0 0
  %750 = vperm.xlu0 %749, %v744
  %v751 = vpop.permute.xlu0 %750
  %754 = vset.pattern.permute.xlu0 0
  %755 = vperm.xlu0 %754, %v745
  %v756 = vpop.permute.xlu0 %755
  %759 = vset.pattern.permute.xlu0 0
  %760 = vperm.xlu0 %759, %v746
  %v761 = vpop.permute.xlu0 %760
  %764 = vset.pattern.permute.xlu0 0
  %765 = vperm.xlu0 %764, %v747
  %v766 = vpop.permute.xlu0 %765
  %v772 = vunpack.c.l.b16 %v740
  %v773 = vunpack.c.l.b16 %v741
  %v774 = vunpack.c.l.b16 %v742
  %v775 = vunpack.c.l.b16 %v743
  %v776 = vpack.c.b16 %v773, %v772
  %v777 = vpack.c.b16 %v775, %v774
  %v779 = vsel %vm237, %v776, 0
  %v782 = vsel %vm237, %v777, 0
  %784 = vmatprep.subr.bf16.mxu0 0
  %785 = vmatpush1.bf16.msra.mxu0 0
  %786 = vmatprep.subr.bf16.mxu0 0
  %787 = vmatpush1.bf16.msra.mxu0 0
  %788 = vmatprep.subr.bf16.mxu0 0
  %789 = vmatpush1.bf16.msra.mxu0 0
  %790 = vmatprep.subr.bf16.mxu0 0
  %791 = vmatpush1.bf16.msra.mxu0 0
  %792 = vmatprep.subr.bf16.mxu0 0
  %793 = vmatpush1.bf16.msra.mxu0 0
  %794 = vmatprep.subr.bf16.mxu0 0
  %795 = vmatpush1.bf16.msra.mxu0 0
  %796 = vmatprep.subr.bf16.mxu0 %v122
  %797 = vmatpush1.bf16.msra.mxu0 %v121
  %798 = vmatprep.subr.bf16.mxu0 %v120
  %799 = vmatpush1.bf16.msra.mxu0 %v119
  %800 = vmatprep.subr.bf16.mxu0 0
  %801 = vmatpush2.bf16.msra.mxu0 0
  %802 = vmatprep.subr.bf16.mxu0 0
  %803 = vmatpush2.bf16.msra.mxu0 0
  %804 = vmatprep.subr.bf16.mxu0 0
  %805 = vmatpush2.bf16.msra.mxu0 0
  %806 = vmatprep.subr.bf16.mxu0 0
  %807 = vmatpush2.bf16.msra.mxu0 0
  %808 = vmatprep.subr.bf16.mxu0 0
  %809 = vmatpush2.bf16.msra.mxu0 0
  %810 = vmatprep.subr.bf16.mxu0 0
  %811 = vmatpush2.bf16.msra.mxu0 0
  %812 = vmatprep.subr.bf16.mxu0 0
  %813 = vmatpush2.bf16.msra.mxu0 0
  %814 = vmatprep.subr.bf16.mxu0 0
  %815 = vmatpush2.bf16.msra.mxu0 0
  %816 = vmatprep.mubr.bf16.mxu0 0
  %817 = vmatmul.mubr.bf16.gmra.mxu0 %v779
  %v818 = vpop.f32.mrf.mxu0
  %v819 = vadd.f32 %v751, %v818
  %v820 = vpop.f32.mrf.mxu0
  %v821 = vadd.f32 %v751, %v820
  %v822 = vpop.f32.mrf.mxu0
  %v823 = vadd.f32 %v756, %v822
  %v824 = vpop.f32.mrf.mxu0
  %v825 = vadd.f32 %v756, %v824
  %826 = vmatprep.mubr.bf16.mxu0 0
  %827 = vmatmul.mubr.bf16.gmra.mxu0 %v782
  %v828 = vpop.f32.mrf.mxu0
  %v829 = vadd.f32 %v761, %v828
  %v830 = vpop.f32.mrf.mxu0
  %v831 = vadd.f32 %v761, %v830
  %v832 = vpop.f32.mrf.mxu0
  %v833 = vadd.f32 %v766, %v832
  %v834 = vpop.f32.mrf.mxu0
  %v835 = vadd.f32 %v766, %v834
  %836 = vdwg.mxu0
  %v837 = vadd.f32 %v732, %v821
  %v838 = vadd.f32 %v733, %v819
  %v839 = vadd.f32 %v734, %v825
  %v840 = vadd.f32 %v735, %v823
  %v841 = vadd.f32 %v736, %v831
  %v842 = vadd.f32 %v737, %v829
  %v843 = vadd.f32 %v738, %v835
  %v844 = vadd.f32 %v739, %v833
  %v845 = vadd.f32 %v837, %v839
  %v846 = vadd.f32 %v845, %v841
  %v847 = vadd.f32 %v846, %v843
  %v848 = vrot.slane %v847, 4
  %v849 = vadd.f32 %v847, %v848
  %v850 = vrot.slane %v849, 2
  %v851 = vadd.f32 %v849, %v850
  %v852 = vrot.slane %v851, 1
  %v853 = vadd.f32 %v851, %v852
  %v854 = vadd.f32 %v838, %v840
  %v855 = vadd.f32 %v854, %v842
  %v856 = vadd.f32 %v855, %v844
  %v857 = vrot.slane %v856, 4
  %v858 = vadd.f32 %v856, %v857
  %v859 = vrot.slane %v858, 2
  %v860 = vadd.f32 %v858, %v859
  %v861 = vrot.slane %v860, 1
  %v862 = vadd.f32 %v860, %v861
  %v863 = vmul.f32 %v853, %v625
  %v864 = vmul.f32 %v862, %v625
  %v865 = vsub.f32 %v837, %v863
  %v866 = vsub.f32 %v838, %v864
  %v867 = vsub.f32 %v839, %v863
  %v868 = vsub.f32 %v840, %v864
  %v869 = vsub.f32 %v841, %v863
  %v870 = vsub.f32 %v842, %v864
  %v871 = vsub.f32 %v843, %v863
  %v872 = vsub.f32 %v844, %v864
  %v873 = vmul.f32 %v865, %v865
  %v874 = vmul.f32 %v866, %v866
  %v875 = vmul.f32 %v867, %v867
  %v876 = vmul.f32 %v868, %v868
  %v877 = vmul.f32 %v869, %v869
  %v878 = vmul.f32 %v870, %v870
  %v879 = vmul.f32 %v871, %v871
  %v880 = vmul.f32 %v872, %v872
  %v881 = vadd.f32 %v873, %v875
  %v882 = vadd.f32 %v881, %v877
  %v883 = vadd.f32 %v882, %v879
  %v884 = vrot.slane %v883, 4
  %v885 = vadd.f32 %v883, %v884
  %v886 = vrot.slane %v885, 2
  %v887 = vadd.f32 %v885, %v886
  %v888 = vrot.slane %v887, 1
  %v889 = vadd.f32 %v887, %v888
  %v890 = vadd.f32 %v874, %v876
  %v891 = vadd.f32 %v890, %v878
  %v892 = vadd.f32 %v891, %v880
  %v893 = vrot.slane %v892, 4
  %v894 = vadd.f32 %v892, %v893
  %v895 = vrot.slane %v894, 2
  %v896 = vadd.f32 %v894, %v895
  %v897 = vrot.slane %v896, 1
  %v898 = vadd.f32 %v896, %v897
  %v899 = vmul.f32 %v889, %v625
  %v900 = vmul.f32 %v898, %v625
  %v901 = vadd.f32 %v899, 1e-05
  %v902 = vadd.f32 %v900, 1e-05
  %v903 = vrsqrt.pop %v901
  %v904 = vrsqrt.pop %v902
  %v905 = vmul.f32 %v865, %v903
  %v906 = vmul.f32 %v866, %v904
  %v907 = vmul.f32 %v867, %v903
  %v908 = vmul.f32 %v868, %v904
  %v909 = vmul.f32 %v869, %v903
  %v910 = vmul.f32 %v870, %v904
  %v911 = vmul.f32 %v871, %v903
  %v912 = vmul.f32 %v872, %v904
  %v913 = vld [vmem:[%s4 + $0x180] sm:$0xff]
  %v914 = vld [vmem:[%s4 + $0x188] sm:$0xff]
  %v915 = vld [vmem:[%s4 + $0x190] sm:$0xff]
  %v916 = vld [vmem:[%s4 + $0x198] sm:$0xff]
  %918 = vset.pattern.permute.xlu0 0
  %919 = vperm.xlu0 %918, %v913
  %v920 = vpop.permute.xlu0 %919
  %923 = vset.pattern.permute.xlu0 0
  %924 = vperm.xlu0 %923, %v914
  %v925 = vpop.permute.xlu0 %924
  %928 = vset.pattern.permute.xlu0 0
  %929 = vperm.xlu0 %928, %v915
  %v930 = vpop.permute.xlu0 %929
  %933 = vset.pattern.permute.xlu0 0
  %934 = vperm.xlu0 %933, %v916
  %v935 = vpop.permute.xlu0 %934
  %v937 = vmul.f32 %v905, %v920
  %v938 = vmul.f32 %v906, %v920
  %v939 = vmul.f32 %v907, %v925
  %v940 = vmul.f32 %v908, %v925
  %v941 = vmul.f32 %v909, %v930
  %v942 = vmul.f32 %v910, %v930
  %v943 = vmul.f32 %v911, %v935
  %v944 = vmul.f32 %v912, %v935
  %v945 = vld [vmem:[%s4 + $0x1a0] sm:$0xff]
  %v946 = vld [vmem:[%s4 + $0x1a8] sm:$0xff]
  %v947 = vld [vmem:[%s4 + $0x1b0] sm:$0xff]
  %v948 = vld [vmem:[%s4 + $0x1b8] sm:$0xff]
  %950 = vset.pattern.permute.xlu0 0
  %951 = vperm.xlu0 %950, %v945
  %v952 = vpop.permute.xlu0 %951
  %955 = vset.pattern.permute.xlu0 0
  %956 = vperm.xlu0 %955, %v946
  %v957 = vpop.permute.xlu0 %956
  %960 = vset.pattern.permute.xlu0 0
  %961 = vperm.xlu0 %960, %v947
  %v962 = vpop.permute.xlu0 %961
  %965 = vset.pattern.permute.xlu0 0
  %966 = vperm.xlu0 %965, %v948
  %v967 = vpop.permute.xlu0 %966
  %v969 = vadd.f32 %v937, %v952
  %v970 = vadd.f32 %v938, %v952
  %v971 = vadd.f32 %v939, %v957
  %v972 = vadd.f32 %v940, %v957
  %v973 = vadd.f32 %v941, %v962
  %v974 = vadd.f32 %v942, %v962
  %v975 = vadd.f32 %v943, %v967
  %v976 = vadd.f32 %v944, %v967
  %v977 = vld [vmem:[%s2 + $0x50] sm:$0xf]
  %v978 = vld [vmem:[%s2 + $0x54] sm:$0xf]
  %v979 = vld [vmem:[%s2 + $0x58] sm:$0xf]
  %v980 = vld [vmem:[%s2 + $0x5c] sm:$0xf]
  %v981 = vld [vmem:[%s2 + $0x60] sm:$0xf]
  %v982 = vld [vmem:[%s2 + $0x64] sm:$0xf]
  %v983 = vld [vmem:[%s2 + $0x68] sm:$0xf]
  %v984 = vld [vmem:[%s2 + $0x6c] sm:$0xf]
  %v985 = vld [vmem:[%s2 + $0x70] sm:$0xf]
  %v986 = vld [vmem:[%s2 + $0x74] sm:$0xf]
  %v987 = vld [vmem:[%s2 + $0x78] sm:$0xf]
  %v988 = vld [vmem:[%s2 + $0x7c] sm:$0xf]
  %v989 = vld [vmem:[%s2 + $0x80] sm:$0xf]
  %v990 = vld [vmem:[%s2 + $0x84] sm:$0xf]
  %v991 = vld [vmem:[%s2 + $0x88] sm:$0xf]
  %v992 = vld [vmem:[%s2 + $0x8c] sm:$0xf]
  %v993 = vpack.c.bf16 %v971, %v969
  %v994 = vpack.c.bf16 %v972, %v970
  %v995 = vpack.c.bf16 %v975, %v973
  %v996 = vpack.c.bf16 %v976, %v974
  %v997 = vld [vmem:[%s4 + $0xa0] sm:$0xff]
  %v998 = vld [vmem:[%s4 + $0xa8] sm:$0xff]
  %v999 = vld [vmem:[%s4 + $0xb0] sm:$0xff]
  %v1000 = vld [vmem:[%s4 + $0xb8] sm:$0xff]
  %v1001 = vld [vmem:[%s4 + $0xc0] sm:$0xff]
  %v1002 = vld [vmem:[%s4 + $0xc8] sm:$0xff]
  %v1003 = vld [vmem:[%s4 + $0xd0] sm:$0xff]
  %v1004 = vld [vmem:[%s4 + $0xd8] sm:$0xff]
  %v1005 = vld [vmem:[%s4 + $0xe0] sm:$0xff]
  %v1006 = vld [vmem:[%s4 + $0xe8] sm:$0xff]
  %v1007 = vld [vmem:[%s4 + $0xf0] sm:$0xff]
  %v1008 = vld [vmem:[%s4 + $0xf8] sm:$0xff]
  %v1009 = vld [vmem:[%s4 + $0x100] sm:$0xff]
  %v1010 = vld [vmem:[%s4 + $0x108] sm:$0xff]
  %v1011 = vld [vmem:[%s4 + $0x110] sm:$0xff]
  %v1012 = vld [vmem:[%s4 + $0x118] sm:$0xff]
  %1014 = vset.pattern.permute.xlu0 0
  %1015 = vperm.xlu0 %1014, %v997
  %v1016 = vpop.permute.xlu0 %1015
  %1019 = vset.pattern.permute.xlu0 0
  %1020 = vperm.xlu0 %1019, %v998
  %v1021 = vpop.permute.xlu0 %1020
  %1024 = vset.pattern.permute.xlu0 0
  %1025 = vperm.xlu0 %1024, %v999
  %v1026 = vpop.permute.xlu0 %1025
  %1029 = vset.pattern.permute.xlu0 0
  %1030 = vperm.xlu0 %1029, %v1000
  %v1031 = vpop.permute.xlu0 %1030
  %1034 = vset.pattern.permute.xlu0 0
  %1035 = vperm.xlu0 %1034, %v1001
  %v1036 = vpop.permute.xlu0 %1035
  %1039 = vset.pattern.permute.xlu0 0
  %1040 = vperm.xlu0 %1039, %v1002
  %v1041 = vpop.permute.xlu0 %1040
  %1044 = vset.pattern.permute.xlu0 0
  %1045 = vperm.xlu0 %1044, %v1003
  %v1046 = vpop.permute.xlu0 %1045
  %1049 = vset.pattern.permute.xlu0 0
  %1050 = vperm.xlu0 %1049, %v1004
  %v1051 = vpop.permute.xlu0 %1050
  %1054 = vset.pattern.permute.xlu0 0
  %1055 = vperm.xlu0 %1054, %v1005
  %v1056 = vpop.permute.xlu0 %1055
  %1059 = vset.pattern.permute.xlu0 0
  %1060 = vperm.xlu0 %1059, %v1006
  %v1061 = vpop.permute.xlu0 %1060
  %1064 = vset.pattern.permute.xlu0 0
  %1065 = vperm.xlu0 %1064, %v1007
  %v1066 = vpop.permute.xlu0 %1065
  %1069 = vset.pattern.permute.xlu0 0
  %1070 = vperm.xlu0 %1069, %v1008
  %v1071 = vpop.permute.xlu0 %1070
  %1074 = vset.pattern.permute.xlu0 0
  %1075 = vperm.xlu0 %1074, %v1009
  %v1076 = vpop.permute.xlu0 %1075
  %1079 = vset.pattern.permute.xlu0 0
  %1080 = vperm.xlu0 %1079, %v1010
  %v1081 = vpop.permute.xlu0 %1080
  %1084 = vset.pattern.permute.xlu0 0
  %1085 = vperm.xlu0 %1084, %v1011
  %v1086 = vpop.permute.xlu0 %1085
  %1089 = vset.pattern.permute.xlu0 0
  %1090 = vperm.xlu0 %1089, %v1012
  %v1091 = vpop.permute.xlu0 %1090
  %v1109 = vunpack.c.l.b16 %v977
  %v1110 = vunpack.c.l.b16 %v978
  %v1111 = vunpack.c.l.b16 %v979
  %v1112 = vunpack.c.l.b16 %v980
  %v1113 = vunpack.c.l.b16 %v981
  %v1114 = vunpack.c.l.b16 %v982
  %v1115 = vunpack.c.l.b16 %v983
  %v1116 = vunpack.c.l.b16 %v984
  %v1117 = vunpack.c.l.b16 %v985
  %v1118 = vunpack.c.l.b16 %v986
  %v1119 = vunpack.c.l.b16 %v987
  %v1120 = vunpack.c.l.b16 %v988
  %v1121 = vunpack.c.l.b16 %v989
  %v1122 = vunpack.c.l.b16 %v990
  %v1123 = vunpack.c.l.b16 %v991
  %v1124 = vunpack.c.l.b16 %v992
  %v1125 = vpack.c.b16 %v1110, %v1109
  %v1126 = vpack.c.b16 %v1112, %v1111
  %v1127 = vpack.c.b16 %v1114, %v1113
  %v1128 = vpack.c.b16 %v1116, %v1115
  %v1129 = vpack.c.b16 %v1118, %v1117
  %v1130 = vpack.c.b16 %v1120, %v1119
  %v1131 = vpack.c.b16 %v1122, %v1121
  %v1132 = vpack.c.b16 %v1124, %v1123
  %v1134 = vsel %vm237, %v1125, 0
  %v1137 = vsel %vm237, %v1126, 0
  %v1140 = vsel %vm237, %v1127, 0
  %v1143 = vsel %vm237, %v1128, 0
  %v1146 = vsel %vm237, %v1129, 0
  %v1149 = vsel %vm237, %v1130, 0
  %v1152 = vsel %vm237, %v1131, 0
  %v1155 = vsel %vm237, %v1132, 0
  %1157 = vmatprep.subr.bf16.mxu0 0
  %1158 = vmatpush1.bf16.msra.mxu0 0
  %1159 = vmatprep.subr.bf16.mxu0 0
  %1160 = vmatpush1.bf16.msra.mxu0 0
  %1161 = vmatprep.subr.bf16.mxu0 0
  %1162 = vmatpush1.bf16.msra.mxu0 0
  %1163 = vmatprep.subr.bf16.mxu0 0
  %1164 = vmatpush1.bf16.msra.mxu0 0
  %1165 = vmatprep.subr.bf16.mxu0 0
  %1166 = vmatpush1.bf16.msra.mxu0 0
  %1167 = vmatprep.subr.bf16.mxu0 0
  %1168 = vmatpush1.bf16.msra.mxu0 0
  %1169 = vmatprep.subr.bf16.mxu0 %v996
  %1170 = vmatpush1.bf16.msra.mxu0 %v995
  %1171 = vmatprep.subr.bf16.mxu0 %v994
  %1172 = vmatpush1.bf16.msra.mxu0 %v993
  %1173 = vmatprep.subr.bf16.mxu0 0
  %1174 = vmatpush2.bf16.msra.mxu0 0
  %1175 = vmatprep.subr.bf16.mxu0 0
  %1176 = vmatpush2.bf16.msra.mxu0 0
  %1177 = vmatprep.subr.bf16.mxu0 0
  %1178 = vmatpush2.bf16.msra.mxu0 0
  %1179 = vmatprep.subr.bf16.mxu0 0
  %1180 = vmatpush2.bf16.msra.mxu0 0
  %1181 = vmatprep.subr.bf16.mxu0 0
  %1182 = vmatpush2.bf16.msra.mxu0 0
  %1183 = vmatprep.subr.bf16.mxu0 0
  %1184 = vmatpush2.bf16.msra.mxu0 0
  %1185 = vmatprep.subr.bf16.mxu0 0
  %1186 = vmatpush2.bf16.msra.mxu0 0
  %1187 = vmatprep.subr.bf16.mxu0 0
  %1188 = vmatpush2.bf16.msra.mxu0 0
  %1189 = vmatprep.mubr.bf16.mxu0 0
  %1190 = vmatmul.mubr.bf16.gmra.mxu0 %v1134
  %v1191 = vpop.f32.mrf.mxu0
  %v1192 = vadd.f32 %v1016, %v1191
  %v1193 = vpop.f32.mrf.mxu0
  %v1194 = vadd.f32 %v1016, %v1193
  %v1195 = vpop.f32.mrf.mxu0
  %v1196 = vadd.f32 %v1021, %v1195
  %v1197 = vpop.f32.mrf.mxu0
  %v1198 = vadd.f32 %v1021, %v1197
  %1199 = vmatprep.mubr.bf16.mxu0 0
  %1200 = vmatmul.mubr.bf16.gmra.mxu0 %v1137
  %v1201 = vpop.f32.mrf.mxu0
  %v1202 = vadd.f32 %v1026, %v1201
  %v1203 = vpop.f32.mrf.mxu0
  %v1204 = vadd.f32 %v1026, %v1203
  %v1205 = vpop.f32.mrf.mxu0
  %v1206 = vadd.f32 %v1031, %v1205
  %v1207 = vpop.f32.mrf.mxu0
  %v1208 = vadd.f32 %v1031, %v1207
  %1209 = vmatprep.mubr.bf16.mxu0 0
  %1210 = vmatmul.mubr.bf16.gmra.mxu0 %v1140
  %v1211 = vpop.f32.mrf.mxu0
  %v1212 = vadd.f32 %v1036, %v1211
  %v1213 = vpop.f32.mrf.mxu0
  %v1214 = vadd.f32 %v1036, %v1213
  %v1215 = vpop.f32.mrf.mxu0
  %v1216 = vadd.f32 %v1041, %v1215
  %v1217 = vpop.f32.mrf.mxu0
  %v1218 = vadd.f32 %v1041, %v1217
  %1219 = vmatprep.mubr.bf16.mxu0 0
  %1220 = vmatmul.mubr.bf16.gmra.mxu0 %v1143
  %v1221 = vpop.f32.mrf.mxu0
  %v1222 = vadd.f32 %v1046, %v1221
  %v1223 = vpop.f32.mrf.mxu0
  %v1224 = vadd.f32 %v1046, %v1223
  %v1225 = vpop.f32.mrf.mxu0
  %v1226 = vadd.f32 %v1051, %v1225
  %v1227 = vpop.f32.mrf.mxu0
  %v1228 = vadd.f32 %v1051, %v1227
  %1229 = vmatprep.mubr.bf16.mxu0 0
  %1230 = vmatmul.mubr.bf16.gmra.mxu0 %v1146
  %v1231 = vpop.f32.mrf.mxu0
  %v1232 = vadd.f32 %v1056, %v1231
  %v1233 = vpop.f32.mrf.mxu0
  %v1234 = vadd.f32 %v1056, %v1233
  %v1235 = vpop.f32.mrf.mxu0
  %v1236 = vadd.f32 %v1061, %v1235
  %v1237 = vpop.f32.mrf.mxu0
  %v1238 = vadd.f32 %v1061, %v1237
  %1239 = vmatprep.mubr.bf16.mxu0 0
  %1240 = vmatmul.mubr.bf16.gmra.mxu0 %v1149
  %v1241 = vpop.f32.mrf.mxu0
  %v1242 = vadd.f32 %v1066, %v1241
  %v1243 = vpop.f32.mrf.mxu0
  %v1244 = vadd.f32 %v1066, %v1243
  %v1245 = vpop.f32.mrf.mxu0
  %v1246 = vadd.f32 %v1071, %v1245
  %v1247 = vpop.f32.mrf.mxu0
  %v1248 = vadd.f32 %v1071, %v1247
  %1249 = vmatprep.mubr.bf16.mxu0 0
  %1250 = vmatmul.mubr.bf16.gmra.mxu0 %v1152
  %v1251 = vpop.f32.mrf.mxu0
  %v1252 = vadd.f32 %v1076, %v1251
  %v1253 = vpop.f32.mrf.mxu0
  %v1254 = vadd.f32 %v1076, %v1253
  %v1255 = vpop.f32.mrf.mxu0
  %v1256 = vadd.f32 %v1081, %v1255
  %v1257 = vpop.f32.mrf.mxu0
  %v1258 = vadd.f32 %v1081, %v1257
  %1259 = vmatprep.mubr.bf16.mxu0 0
  %1260 = vmatmul.mubr.bf16.gmra.mxu0 %v1155
  %v1261 = vpop.f32.mrf.mxu0
  %v1262 = vadd.f32 %v1086, %v1261
  %v1263 = vpop.f32.mrf.mxu0
  %v1264 = vadd.f32 %v1086, %v1263
  %v1265 = vpop.f32.mrf.mxu0
  %v1266 = vadd.f32 %v1091, %v1265
  %v1267 = vpop.f32.mrf.mxu0
  %v1268 = vadd.f32 %v1091, %v1267
  %1269 = vdwg.mxu0
  %v1270 = vmul.f32 %v1192, 0.5
  %v1271 = vmul.f32 %v1194, 0.5
  %v1272 = vmul.f32 %v1196, 0.5
  %v1273 = vmul.f32 %v1198, 0.5
  %v1274 = vmul.f32 %v1202, 0.5
  %v1275 = vmul.f32 %v1204, 0.5
  %v1276 = vmul.f32 %v1206, 0.5
  %v1277 = vmul.f32 %v1208, 0.5
  %v1278 = vmul.f32 %v1212, 0.5
  %v1279 = vmul.f32 %v1214, 0.5
  %v1280 = vmul.f32 %v1216, 0.5
  %v1281 = vmul.f32 %v1218, 0.5
  %v1282 = vmul.f32 %v1222, 0.5
  %v1283 = vmul.f32 %v1224, 0.5
  %v1284 = vmul.f32 %v1226, 0.5
  %v1285 = vmul.f32 %v1228, 0.5
  %v1286 = vmul.f32 %v1232, 0.5
  %v1287 = vmul.f32 %v1234, 0.5
  %v1288 = vmul.f32 %v1236, 0.5
  %v1289 = vmul.f32 %v1238, 0.5
  %v1290 = vmul.f32 %v1242, 0.5
  %v1291 = vmul.f32 %v1244, 0.5
  %v1292 = vmul.f32 %v1246, 0.5
  %v1293 = vmul.f32 %v1248, 0.5
  %v1294 = vmul.f32 %v1252, 0.5
  %v1295 = vmul.f32 %v1254, 0.5
  %v1296 = vmul.f32 %v1256, 0.5
  %v1297 = vmul.f32 %v1258, 0.5
  %v1298 = vmul.f32 %v1262, 0.5
  %v1299 = vmul.f32 %v1264, 0.5
  %v1300 = vmul.f32 %v1266, 0.5
  %v1301 = vmul.f32 %v1268, 0.5
  %v1302 = vmul.f32 %v1192, 0.70710677
  %v1303 = vmul.f32 %v1194, 0.70710677
  %v1304 = vmul.f32 %v1196, 0.70710677
  %v1305 = vmul.f32 %v1198, 0.70710677
  %v1306 = vmul.f32 %v1202, 0.70710677
  %v1307 = vmul.f32 %v1204, 0.70710677
  %v1308 = vmul.f32 %v1206, 0.70710677
  %v1309 = vmul.f32 %v1208, 0.70710677
  %v1310 = vmul.f32 %v1212, 0.70710677
  %v1311 = vmul.f32 %v1214, 0.70710677
  %v1312 = vmul.f32 %v1216, 0.70710677
  %v1313 = vmul.f32 %v1218, 0.70710677
  %v1314 = vmul.f32 %v1222, 0.70710677
  %v1315 = vmul.f32 %v1224, 0.70710677
  %v1316 = vmul.f32 %v1226, 0.70710677
  %v1317 = vmul.f32 %v1228, 0.70710677
  %v1318 = vmul.f32 %v1232, 0.70710677
  %v1319 = vmul.f32 %v1234, 0.70710677
  %v1320 = vmul.f32 %v1236, 0.70710677
  %v1321 = vmul.f32 %v1238, 0.70710677
  %v1322 = vmul.f32 %v1242, 0.70710677
  %v1323 = vmul.f32 %v1244, 0.70710677
  %v1324 = vmul.f32 %v1246, 0.70710677
  %v1325 = vmul.f32 %v1248, 0.70710677
  %v1326 = vmul.f32 %v1252, 0.70710677
  %v1327 = vmul.f32 %v1254, 0.70710677
  %v1328 = vmul.f32 %v1256, 0.70710677
  %v1329 = vmul.f32 %v1258, 0.70710677
  %v1330 = vmul.f32 %v1262, 0.70710677
  %v1331 = vmul.f32 %v1264, 0.70710677
  %v1332 = vmul.f32 %v1266, 0.70710677
  %v1333 = vmul.f32 %v1268, 0.70710677
  %v1334 = verf.f32.pop %v1302
  %v1335 = verf.f32.pop %v1303
  %v1336 = verf.f32.pop %v1304
  %v1337 = verf.f32.pop %v1305
  %v1338 = verf.f32.pop %v1306
  %v1339 = verf.f32.pop %v1307
  %v1340 = verf.f32.pop %v1308
  %v1341 = verf.f32.pop %v1309
  %v1342 = verf.f32.pop %v1310
  %v1343 = verf.f32.pop %v1311
  %v1344 = verf.f32.pop %v1312
  %v1345 = verf.f32.pop %v1313
  %v1346 = verf.f32.pop %v1314
  %v1347 = verf.f32.pop %v1315
  %v1348 = verf.f32.pop %v1316
  %v1349 = verf.f32.pop %v1317
  %v1350 = verf.f32.pop %v1318
  %v1351 = verf.f32.pop %v1319
  %v1352 = verf.f32.pop %v1320
  %v1353 = verf.f32.pop %v1321
  %v1354 = verf.f32.pop %v1322
  %v1355 = verf.f32.pop %v1323
  %v1356 = verf.f32.pop %v1324
  %v1357 = verf.f32.pop %v1325
  %v1358 = verf.f32.pop %v1326
  %v1359 = verf.f32.pop %v1327
  %v1360 = verf.f32.pop %v1328
  %v1361 = verf.f32.pop %v1329
  %v1362 = verf.f32.pop %v1330
  %v1363 = verf.f32.pop %v1331
  %v1364 = verf.f32.pop %v1332
  %v1365 = verf.f32.pop %v1333
  %v1366 = vadd.f32 %v1334, 1.0
  %v1367 = vadd.f32 %v1335, 1.0
  %v1368 = vadd.f32 %v1336, 1.0
  %v1369 = vadd.f32 %v1337, 1.0
  %v1370 = vadd.f32 %v1338, 1.0
  %v1371 = vadd.f32 %v1339, 1.0
  %v1372 = vadd.f32 %v1340, 1.0
  %v1373 = vadd.f32 %v1341, 1.0
  %v1374 = vadd.f32 %v1342, 1.0
  %v1375 = vadd.f32 %v1343, 1.0
  %v1376 = vadd.f32 %v1344, 1.0
  %v1377 = vadd.f32 %v1345, 1.0
  %v1378 = vadd.f32 %v1346, 1.0
  %v1379 = vadd.f32 %v1347, 1.0
  %v1380 = vadd.f32 %v1348, 1.0
  %v1381 = vadd.f32 %v1349, 1.0
  %v1382 = vadd.f32 %v1350, 1.0
  %v1383 = vadd.f32 %v1351, 1.0
  %v1384 = vadd.f32 %v1352, 1.0
  %v1385 = vadd.f32 %v1353, 1.0
  %v1386 = vadd.f32 %v1354, 1.0
  %v1387 = vadd.f32 %v1355, 1.0
  %v1388 = vadd.f32 %v1356, 1.0
  %v1389 = vadd.f32 %v1357, 1.0
  %v1390 = vadd.f32 %v1358, 1.0
  %v1391 = vadd.f32 %v1359, 1.0
  %v1392 = vadd.f32 %v1360, 1.0
  %v1393 = vadd.f32 %v1361, 1.0
  %v1394 = vadd.f32 %v1362, 1.0
  %v1395 = vadd.f32 %v1363, 1.0
  %v1396 = vadd.f32 %v1364, 1.0
  %v1397 = vadd.f32 %v1365, 1.0
  %v1398 = vmul.f32 %v1270, %v1366
  %v1399 = vmul.f32 %v1271, %v1367
  %v1400 = vmul.f32 %v1272, %v1368
  %v1401 = vmul.f32 %v1273, %v1369
  %v1402 = vmul.f32 %v1274, %v1370
  %v1403 = vmul.f32 %v1275, %v1371
  %v1404 = vmul.f32 %v1276, %v1372
  %v1405 = vmul.f32 %v1277, %v1373
  %v1406 = vmul.f32 %v1278, %v1374
  %v1407 = vmul.f32 %v1279, %v1375
  %v1408 = vmul.f32 %v1280, %v1376
  %v1409 = vmul.f32 %v1281, %v1377
  %v1410 = vmul.f32 %v1282, %v1378
  %v1411 = vmul.f32 %v1283, %v1379
  %v1412 = vmul.f32 %v1284, %v1380
  %v1413 = vmul.f32 %v1285, %v1381
  %v1414 = vmul.f32 %v1286, %v1382
  %v1415 = vmul.f32 %v1287, %v1383
  %v1416 = vmul.f32 %v1288, %v1384
  %v1417 = vmul.f32 %v1289, %v1385
  %v1418 = vmul.f32 %v1290, %v1386
  %v1419 = vmul.f32 %v1291, %v1387
  %v1420 = vmul.f32 %v1292, %v1388
  %v1421 = vmul.f32 %v1293, %v1389
  %v1422 = vmul.f32 %v1294, %v1390
  %v1423 = vmul.f32 %v1295, %v1391
  %v1424 = vmul.f32 %v1296, %v1392
  %v1425 = vmul.f32 %v1297, %v1393
  %v1426 = vmul.f32 %v1298, %v1394
  %v1427 = vmul.f32 %v1299, %v1395
  %v1428 = vmul.f32 %v1300, %v1396
  %v1429 = vmul.f32 %v1301, %v1397
  %v1430 = vld [vmem:[%s3] sm:$0xf]
  %v1431 = vld [vmem:[%s3 + $0x4] sm:$0xf]
  %v1432 = vld [vmem:[%s3 + $0x8] sm:$0xf]
  %v1433 = vld [vmem:[%s3 + $0xc] sm:$0xf]
  %v1434 = vpack.c.bf16 %v1400, %v1398
  %v1435 = vpack.c.bf16 %v1401, %v1399
  %v1436 = vpack.c.bf16 %v1404, %v1402
  %v1437 = vpack.c.bf16 %v1405, %v1403
  %v1438 = vpack.c.bf16 %v1408, %v1406
  %v1439 = vpack.c.bf16 %v1409, %v1407
  %v1440 = vpack.c.bf16 %v1412, %v1410
  %v1441 = vpack.c.bf16 %v1413, %v1411
  %v1442 = vpack.c.bf16 %v1416, %v1414
  %v1443 = vpack.c.bf16 %v1417, %v1415
  %v1444 = vpack.c.bf16 %v1420, %v1418
  %v1445 = vpack.c.bf16 %v1421, %v1419
  %v1446 = vpack.c.bf16 %v1424, %v1422
  %v1447 = vpack.c.bf16 %v1425, %v1423
  %v1448 = vpack.c.bf16 %v1428, %v1426
  %v1449 = vpack.c.bf16 %v1429, %v1427
  %v1450 = vld [vmem:[%s4 + $0x120] sm:$0xff]
  %v1451 = vld [vmem:[%s4 + $0x128] sm:$0xff]
  %v1452 = vld [vmem:[%s4 + $0x130] sm:$0xff]
  %v1453 = vld [vmem:[%s4 + $0x138] sm:$0xff]
  %1455 = vset.pattern.permute.xlu0 0
  %1456 = vperm.xlu0 %1455, %v1450
  %v1457 = vpop.permute.xlu0 %1456
  %1460 = vset.pattern.permute.xlu0 0
  %1461 = vperm.xlu0 %1460, %v1451
  %v1462 = vpop.permute.xlu0 %1461
  %1465 = vset.pattern.permute.xlu0 0
  %1466 = vperm.xlu0 %1465, %v1452
  %v1467 = vpop.permute.xlu0 %1466
  %1470 = vset.pattern.permute.xlu0 0
  %1471 = vperm.xlu0 %1470, %v1453
  %v1472 = vpop.permute.xlu0 %1471
  %v1478 = vunpack.c.l.b16 %v1430
  %v1479 = vunpack.c.l.b16 %v1431
  %v1480 = vunpack.c.l.b16 %v1432
  %v1481 = vunpack.c.l.b16 %v1433
  %v1482 = vpack.c.b16 %v1479, %v1478
  %v1483 = vpack.c.b16 %v1481, %v1480
  %1486 = vmatprep.subr.bf16.mxu0 %v1449
  %1487 = vmatpush1.bf16.msra.mxu0 %v1448
  %1488 = vmatprep.subr.bf16.mxu0 %v1447
  %1489 = vmatpush1.bf16.msra.mxu0 %v1446
  %1490 = vmatprep.subr.bf16.mxu0 %v1445
  %1491 = vmatpush1.bf16.msra.mxu0 %v1444
  %1492 = vmatprep.subr.bf16.mxu0 %v1443
  %1493 = vmatpush1.bf16.msra.mxu0 %v1442
  %1494 = vmatprep.subr.bf16.mxu0 %v1441
  %1495 = vmatpush1.bf16.msra.mxu0 %v1440
  %1496 = vmatprep.subr.bf16.mxu0 %v1439
  %1497 = vmatpush1.bf16.msra.mxu0 %v1438
  %1498 = vmatprep.subr.bf16.mxu0 %v1437
  %1499 = vmatpush1.bf16.msra.mxu0 %v1436
  %1500 = vmatprep.subr.bf16.mxu0 %v1435
  %1501 = vmatpush1.bf16.msra.mxu0 %v1434
  %1502 = vmatprep.subr.bf16.mxu0 0
  %1503 = vmatpush2.bf16.msra.mxu0 0
  %1504 = vmatprep.subr.bf16.mxu0 0
  %1505 = vmatpush2.bf16.msra.mxu0 0
  %1506 = vmatprep.subr.bf16.mxu0 0
  %1507 = vmatpush2.bf16.msra.mxu0 0
  %1508 = vmatprep.subr.bf16.mxu0 0
  %1509 = vmatpush2.bf16.msra.mxu0 0
  %1510 = vmatprep.subr.bf16.mxu0 0
  %1511 = vmatpush2.bf16.msra.mxu0 0
  %1512 = vmatprep.subr.bf16.mxu0 0
  %1513 = vmatpush2.bf16.msra.mxu0 0
  %1514 = vmatprep.subr.bf16.mxu0 0
  %1515 = vmatpush2.bf16.msra.mxu0 0
  %1516 = vmatprep.subr.bf16.mxu0 0
  %1517 = vmatpush2.bf16.msra.mxu0 0
  %1518 = vmatprep.mubr.bf16.mxu0 0
  %1519 = vmatmul.mubr.bf16.gmra.mxu0 %v1482
  %v1520 = vpop.f32.mrf.mxu0
  %v1521 = vadd.f32 %v1457, %v1520
  %v1522 = vpop.f32.mrf.mxu0
  %v1523 = vadd.f32 %v1457, %v1522
  %v1524 = vpop.f32.mrf.mxu0
  %v1525 = vadd.f32 %v1462, %v1524
  %v1526 = vpop.f32.mrf.mxu0
  %v1527 = vadd.f32 %v1462, %v1526
  %1528 = vmatprep.mubr.bf16.mxu0 0
  %1529 = vmatmul.mubr.bf16.gmra.mxu0 %v1483
  %v1530 = vpop.f32.mrf.mxu0
  %v1531 = vadd.f32 %v1467, %v1530
  %v1532 = vpop.f32.mrf.mxu0
  %v1533 = vadd.f32 %v1467, %v1532
  %v1534 = vpop.f32.mrf.mxu0
  %v1535 = vadd.f32 %v1472, %v1534
  %v1536 = vpop.f32.mrf.mxu0
  %v1537 = vadd.f32 %v1472, %v1536
  %1538 = vdwg.mxu0
  %v1539 = vadd.f32 %v969, %v1521
  %v1540 = vadd.f32 %v970, %v1523
  %v1541 = vadd.f32 %v971, %v1525
  %v1542 = vadd.f32 %v972, %v1527
  %v1543 = vadd.f32 %v973, %v1531
  %v1544 = vadd.f32 %v974, %v1533
  %v1545 = vadd.f32 %v975, %v1535
  %v1546 = vadd.f32 %v976, %v1537
  %v1547 = vadd.f32 %v1539, %v1541
  %v1548 = vadd.f32 %v1547, %v1543
  %v1549 = vadd.f32 %v1548, %v1545
  %v1550 = vrot.slane %v1549, 4
  %v1551 = vadd.f32 %v1549, %v1550
  %v1552 = vrot.slane %v1551, 2
  %v1553 = vadd.f32 %v1551, %v1552
  %v1554 = vrot.slane %v1553, 1
  %v1555 = vadd.f32 %v1553, %v1554
  %v1556 = vadd.f32 %v1540, %v1542
  %v1557 = vadd.f32 %v1556, %v1544
  %v1558 = vadd.f32 %v1557, %v1546
  %v1559 = vrot.slane %v1558, 4
  %v1560 = vadd.f32 %v1558, %v1559
  %v1561 = vrot.slane %v1560, 2
  %v1562 = vadd.f32 %v1560, %v1561
  %v1563 = vrot.slane %v1562, 1
  %v1564 = vadd.f32 %v1562, %v1563
  %v1565 = vmul.f32 %v1555, %v625
  %v1566 = vmul.f32 %v1564, %v625
  %v1567 = vsub.f32 %v1539, %v1565
  %v1568 = vsub.f32 %v1540, %v1566
  %v1569 = vsub.f32 %v1541, %v1565
  %v1570 = vsub.f32 %v1542, %v1566
  %v1571 = vsub.f32 %v1543, %v1565
  %v1572 = vsub.f32 %v1544, %v1566
  %v1573 = vsub.f32 %v1545, %v1565
  %v1574 = vsub.f32 %v1546, %v1566
  %v1575 = vmul.f32 %v1567, %v1567
  %v1576 = vmul.f32 %v1568, %v1568
  %v1577 = vmul.f32 %v1569, %v1569
  %v1578 = vmul.f32 %v1570, %v1570
  %v1579 = vmul.f32 %v1571, %v1571
  %v1580 = vmul.f32 %v1572, %v1572
  %v1581 = vmul.f32 %v1573, %v1573
  %v1582 = vmul.f32 %v1574, %v1574
  %v1583 = vadd.f32 %v1575, %v1577
  %v1584 = vadd.f32 %v1583, %v1579
  %v1585 = vadd.f32 %v1584, %v1581
  %v1586 = vrot.slane %v1585, 4
  %v1587 = vadd.f32 %v1585, %v1586
  %v1588 = vrot.slane %v1587, 2
  %v1589 = vadd.f32 %v1587, %v1588
  %v1590 = vrot.slane %v1589, 1
  %v1591 = vadd.f32 %v1589, %v1590
  %v1592 = vadd.f32 %v1576, %v1578
  %v1593 = vadd.f32 %v1592, %v1580
  %v1594 = vadd.f32 %v1593, %v1582
  %v1595 = vrot.slane %v1594, 4
  %v1596 = vadd.f32 %v1594, %v1595
  %v1597 = vrot.slane %v1596, 2
  %v1598 = vadd.f32 %v1596, %v1597
  %v1599 = vrot.slane %v1598, 1
  %v1600 = vadd.f32 %v1598, %v1599
  %v1601 = vmul.f32 %v1591, %v625
  %v1602 = vmul.f32 %v1600, %v625
  %v1603 = vadd.f32 %v1601, 1e-05
  %v1604 = vadd.f32 %v1602, 1e-05
  %v1605 = vrsqrt.pop %v1603
  %v1606 = vrsqrt.pop %v1604
  %v1607 = vmul.f32 %v1567, %v1605
  %v1608 = vmul.f32 %v1568, %v1606
  %v1609 = vmul.f32 %v1569, %v1605
  %v1610 = vmul.f32 %v1570, %v1606
  %v1611 = vmul.f32 %v1571, %v1605
  %v1612 = vmul.f32 %v1572, %v1606
  %v1613 = vmul.f32 %v1573, %v1605
  %v1614 = vmul.f32 %v1574, %v1606
  %v1615 = vld [vmem:[%s4 + $0x1c0] sm:$0xff]
  %v1616 = vld [vmem:[%s4 + $0x1c8] sm:$0xff]
  %v1617 = vld [vmem:[%s4 + $0x1d0] sm:$0xff]
  %v1618 = vld [vmem:[%s4 + $0x1d8] sm:$0xff]
  %1620 = vset.pattern.permute.xlu0 0
  %1621 = vperm.xlu0 %1620, %v1615
  %v1622 = vpop.permute.xlu0 %1621
  %1625 = vset.pattern.permute.xlu0 0
  %1626 = vperm.xlu0 %1625, %v1616
  %v1627 = vpop.permute.xlu0 %1626
  %1630 = vset.pattern.permute.xlu0 0
  %1631 = vperm.xlu0 %1630, %v1617
  %v1632 = vpop.permute.xlu0 %1631
  %1635 = vset.pattern.permute.xlu0 0
  %1636 = vperm.xlu0 %1635, %v1618
  %v1637 = vpop.permute.xlu0 %1636
  %v1639 = vmul.f32 %v1607, %v1622
  %v1640 = vmul.f32 %v1608, %v1622
  %v1641 = vmul.f32 %v1609, %v1627
  %v1642 = vmul.f32 %v1610, %v1627
  %v1643 = vmul.f32 %v1611, %v1632
  %v1644 = vmul.f32 %v1612, %v1632
  %v1645 = vmul.f32 %v1613, %v1637
  %v1646 = vmul.f32 %v1614, %v1637
  %v1647 = vld [vmem:[%s4 + $0x1e0] sm:$0xff]
  %v1648 = vld [vmem:[%s4 + $0x1e8] sm:$0xff]
  %v1649 = vld [vmem:[%s4 + $0x1f0] sm:$0xff]
  %v1650 = vld [vmem:[%s4 + $0x1f8] sm:$0xff]
  %1652 = vset.pattern.permute.xlu0 0
  %1653 = vperm.xlu0 %1652, %v1647
  %v1654 = vpop.permute.xlu0 %1653
  %1657 = vset.pattern.permute.xlu0 0
  %1658 = vperm.xlu0 %1657, %v1648
  %v1659 = vpop.permute.xlu0 %1658
  %1662 = vset.pattern.permute.xlu0 0
  %1663 = vperm.xlu0 %1662, %v1649
  %v1664 = vpop.permute.xlu0 %1663
  %1667 = vset.pattern.permute.xlu0 0
  %1668 = vperm.xlu0 %1667, %v1650
  %v1669 = vpop.permute.xlu0 %1668
  %v1671 = vadd.f32 %v1639, %v1654
  %v1672 = vadd.f32 %v1640, %v1654
  %v1673 = vadd.f32 %v1641, %v1659
  %v1674 = vadd.f32 %v1642, %v1659
  %v1675 = vadd.f32 %v1643, %v1664
  %v1676 = vadd.f32 %v1644, %v1664
  %v1677 = vadd.f32 %v1645, %v1669
  %v1678 = vadd.f32 %v1646, %v1669
  %1679 = vxpose.xlu0.b32.start [1/16] %v1671, 128
  %1680 = vxpose.xlu0.b32.cont [2/16] %v1673, 128
  %1681 = vxpose.xlu0.b32.cont [3/16] %v1675, 128
  %1682 = vxpose.xlu0.b32.cont [4/16] %v1677, 128
  %1683 = vxpose.xlu0.b32.cont [5/16] 0.0, 128
  %1684 = vxpose.xlu0.b32.cont [6/16] 0.0, 128
  %1685 = vxpose.xlu0.b32.cont [7/16] 0.0, 128
  %1686 = vxpose.xlu0.b32.cont [8/16] 0.0, 128
  %1687 = vxpose.xlu0.b32.cont [9/16] 0.0, 128
  %1688 = vxpose.xlu0.b32.cont [10/16] 0.0, 128
  %1689 = vxpose.xlu0.b32.cont [11/16] 0.0, 128
  %1690 = vxpose.xlu0.b32.cont [12/16] 0.0, 128
  %1691 = vxpose.xlu0.b32.cont [13/16] 0.0, 128
  %1692 = vxpose.xlu0.b32.cont [14/16] 0.0, 128
  %1693 = vxpose.xlu0.b32.cont [15/16] 0.0, 128
  %1694 = vxpose.xlu0.b32.end [16/16] 0.0, 128
  %v1695 = vpop.trf.xlu0
  %v1696 = vpop.trf.xlu0
  %v1697 = vpop.trf.xlu0
  %v1698 = vpop.trf.xlu0
  %v1699 = vpop.trf.xlu0
  %v1700 = vpop.trf.xlu0
  %v1701 = vpop.trf.xlu0
  %v1702 = vpop.trf.xlu0
  %v1703 = vpop.trf.xlu0
  %v1704 = vpop.trf.xlu0
  %v1705 = vpop.trf.xlu0
  %v1706 = vpop.trf.xlu0
  %v1707 = vpop.trf.xlu0
  %v1708 = vpop.trf.xlu0
  %v1709 = vpop.trf.xlu0
  %v1710 = vpop.trf.xlu0
  %1711 = vst.msk [vmem:[%s5] sm:$0xff] %vm237, %v1695
  %1712 = vst.msk [vmem:[%s5 + $0x8] sm:$0xff] %vm237, %v1696
  %1713 = vst.msk [vmem:[%s5 + $0x10] sm:$0xff] %vm237, %v1697
  %1714 = vst.msk [vmem:[%s5 + $0x18] sm:$0xff] %vm237, %v1698
  %1715 = vst.msk [vmem:[%s5 + $0x20] sm:$0xff] %vm237, %v1699
  %1716 = vst.msk [vmem:[%s5 + $0x28] sm:$0xff] %vm237, %v1700
  %1717 = vst.msk [vmem:[%s5 + $0x30] sm:$0xff] %vm237, %v1701
  %1718 = vst.msk [vmem:[%s5 + $0x38] sm:$0xff] %vm237, %v1702
  %1719 = vst.msk [vmem:[%s5 + $0x40] sm:$0xff] %vm237, %v1703
  %1720 = vst.msk [vmem:[%s5 + $0x48] sm:$0xff] %vm237, %v1704
  %1721 = vst.msk [vmem:[%s5 + $0x50] sm:$0xff] %vm237, %v1705
  %1722 = vst.msk [vmem:[%s5 + $0x58] sm:$0xff] %vm237, %v1706
  %1723 = vst.msk [vmem:[%s5 + $0x60] sm:$0xff] %vm237, %v1707
  %1724 = vst.msk [vmem:[%s5 + $0x68] sm:$0xff] %vm237, %v1708
  %1725 = vst.msk [vmem:[%s5 + $0x70] sm:$0xff] %vm237, %v1709
  %1726 = vst.msk [vmem:[%s5 + $0x78] sm:$0xff] %vm237, %v1710
  %1727 = vxpose.xlu0.b32.start [1/16] %v1672, 128
  %1728 = vxpose.xlu0.b32.cont [2/16] %v1674, 128
  %1729 = vxpose.xlu0.b32.cont [3/16] %v1676, 128
  %1730 = vxpose.xlu0.b32.cont [4/16] %v1678, 128
  %1731 = vxpose.xlu0.b32.cont [5/16] 0.0, 128
  %1732 = vxpose.xlu0.b32.cont [6/16] 0.0, 128
  %1733 = vxpose.xlu0.b32.cont [7/16] 0.0, 128
  %1734 = vxpose.xlu0.b32.cont [8/16] 0.0, 128
  %1735 = vxpose.xlu0.b32.cont [9/16] 0.0, 128
  %1736 = vxpose.xlu0.b32.cont [10/16] 0.0, 128
  %1737 = vxpose.xlu0.b32.cont [11/16] 0.0, 128
  %1738 = vxpose.xlu0.b32.cont [12/16] 0.0, 128
  %1739 = vxpose.xlu0.b32.cont [13/16] 0.0, 128
  %1740 = vxpose.xlu0.b32.cont [14/16] 0.0, 128
  %1741 = vxpose.xlu0.b32.cont [15/16] 0.0, 128
  %1742 = vxpose.xlu0.b32.end [16/16] 0.0, 128
  %v1743 = vpop.trf.xlu0
  %v1744 = vpop.trf.xlu0
  %v1745 = vpop.trf.xlu0
  %v1746 = vpop.trf.xlu0
  %v1747 = vpop.trf.xlu0
  %v1748 = vpop.trf.xlu0
  %v1749 = vpop.trf.xlu0
  %v1750 = vpop.trf.xlu0
  %v1751 = vpop.trf.xlu0
  %v1752 = vpop.trf.xlu0
  %v1753 = vpop.trf.xlu0
  %v1754 = vpop.trf.xlu0
  %v1755 = vpop.trf.xlu0
  %v1756 = vpop.trf.xlu0
  %v1757 = vpop.trf.xlu0
  %v1758 = vpop.trf.xlu0
  %1759 = vst.msk [vmem:[%s6] sm:$0xff] %vm237, %v1743
  %1760 = vst.msk [vmem:[%s6 + $0x8] sm:$0xff] %vm237, %v1744
  %1761 = vst.msk [vmem:[%s6 + $0x10] sm:$0xff] %vm237, %v1745
  %1762 = vst.msk [vmem:[%s6 + $0x18] sm:$0xff] %vm237, %v1746
  %1763 = vst.msk [vmem:[%s6 + $0x20] sm:$0xff] %vm237, %v1747
  %1764 = vst.msk [vmem:[%s6 + $0x28] sm:$0xff] %vm237, %v1748
  %1765 = vst.msk [vmem:[%s6 + $0x30] sm:$0xff] %vm237, %v1749
  %1766 = vst.msk [vmem:[%s6 + $0x38] sm:$0xff] %vm237, %v1750
  %1767 = vst.msk [vmem:[%s6 + $0x40] sm:$0xff] %vm237, %v1751
  %1768 = vst.msk [vmem:[%s6 + $0x48] sm:$0xff] %vm237, %v1752
  %1769 = vst.msk [vmem:[%s6 + $0x50] sm:$0xff] %vm237, %v1753
  %1770 = vst.msk [vmem:[%s6 + $0x58] sm:$0xff] %vm237, %v1754
  %1771 = vst.msk [vmem:[%s6 + $0x60] sm:$0xff] %vm237, %v1755
  %1772 = vst.msk [vmem:[%s6 + $0x68] sm:$0xff] %vm237, %v1756
  %1773 = vst.msk [vmem:[%s6 + $0x70] sm:$0xff] %vm237, %v1757
  %1774 = vst.msk [vmem:[%s6 + $0x78] sm:$0xff] %vm237, %v1758
  // Predicated region
  $region22: #{tpu_custom_call.1} parent=0 // pred_check
    _
  $region23: #{tpu_custom_call.1} parent=0 // pred_check_branch
    %1776 = sbr.rel (0) target = $region25
  $region24: #{tpu_custom_call.1} parent=0 // pred_region
    _
  $region25: #{tpu_custom_call.1} parent=0 // pred_fallthru
    _
  // Predicated region
  $region26: #{tpu_custom_call.1} parent=0 // pred_check
    _
  $region27: #{tpu_custom_call.1} parent=0 // pred_check_branch
    %1778 = sbr.rel (0) target = $region29
  $region28: #{tpu_custom_call.1} parent=0 // pred_region
    _
  $region29: #{tpu_custom_call.1} parent=0 // pred_fallthru
    _
  // Predicated region
  $region30: #{tpu_custom_call.1} parent=0 // pred_check
    _
  $region31: #{tpu_custom_call.1} parent=0 // pred_check_branch
    %1780 = sbr.rel (0) target = $region33
  $region32: #{tpu_custom_call.1} parent=0 // pred_region
    _
  $region33: #{tpu_custom_call.1} parent=0 // pred_fallthru
    _
  // Predicated region
  $region34: #{tpu_custom_call.1} parent=0 // pred_check
    _
  $region35: #{tpu_custom_call.1} parent=0 // pred_check_branch
    %1782 = sbr.rel (0) target = $region37
  $region36: #{tpu_custom_call.1} parent=0 // pred_region
    _
  $region37: #{tpu_custom_call.1} parent=0 // pred_fallthru
    _

</llo_original>
